<compile_context>
chip_gen: v6e
topology: v6e:2x2x1
jax: 0.10.0
libtpu: 0.0.40
codegen_flags: <defaults>
</compile_context>

<pallas_src>
import jax
import jax.numpy as jnp
from jax.experimental import pallas as pl
from jax.experimental.pallas import tpu as pltpu


def _cdiv(a, b):
    return -(-a // b)


def _round_up(a, m):
    return _cdiv(a, m) * m


def _make_fm_kernel(n, tn, needs_mask):
    """Kernel over grid (batch_tiles, feature_tiles); feature axis accumulates."""

    def fm_kernel(x_ref, v_ref, v2s_ref, o_ref, xv_acc, pow_acc):
        j = pl.program_id(1)

        @pl.when(j == 0)
        def _init():
            xv_acc[...] = jnp.zeros_like(xv_acc)
            pow_acc[...] = jnp.zeros_like(pow_acc)

        x = x_ref[...]
        if needs_mask:
            # Only the last feature block can read past column n; zero those
            # lanes so unspecified data (possibly NaN) never enters the sums.
            col = j * tn + jax.lax.broadcasted_iota(jnp.int32, x.shape, 1)
            x = jnp.where(col < n, x, jnp.zeros_like(x))

        # Main MXU pass in the input's native dtype, f32 accumulation.
        xv_acc[...] += jnp.dot(x, v_ref[...], preferred_element_type=jnp.float32)

        # Squared-feature path kept in f32 (cancellation sensitive).
        xf = x.astype(jnp.float32)
        x2 = xf * xf
        # (1, tn) x (tb, tn) -> (1, tb): the batch index lands on the lane axis,
        # so the final store below is lane-dense.
        # TODO(synk): confirm via pl.lower_as_mlir that this minor-dim
        # contraction does not materialize a transpose of the (tb, tn) operand;
        # if it does, switch to x2 @ v2sum.T + a small (tb,1)->(1,tb) relayout.
        pow_acc[...] += jnp.einsum("zn,bn->zb", v2s_ref[...], x2,
                                   preferred_element_type=jnp.float32)

        @pl.when(j == pl.num_programs(1) - 1)
        def _finalize():
            t = xv_acc[...]
            t2 = t * t
            ones_k = jnp.ones((1, t2.shape[1]), jnp.float32)
            sum_sq = jnp.einsum("zk,bk->zb", ones_k, t2,
                                preferred_element_type=jnp.float32)
            o_ref[...] = (0.5 * (sum_sq - pow_acc[...])).astype(o_ref.dtype)

    return fm_kernel


def factorization_machine(x, V, *, tb=None, tn=None, out_dtype=jnp.float32,
                          target_tile_bytes=4 << 20, vmem_budget_bytes=48 << 20,
                          vmem_limit_bytes=None):
    """FM second-order interaction; returns (B, 1) like the PyTorch module."""
    B, n = x.shape
    n_v, k = V.shape
    assert n == n_v, "x feature dim must match V rows"

    x_isz = jnp.dtype(x.dtype).itemsize
    v_isz = jnp.dtype(V.dtype).itemsize
    out_isz = jnp.dtype(out_dtype).itemsize

    # ---- feature tiling (trailing "arbitrary" reduction axis) --------------
    if tn is None:
        tn = n if n <= 2048 else 1024
    tn = min(tn, n)
    if tn < n:
        tn = max(128, (tn // 128) * 128)          # lane-aligned feature blocks
        n_pad = _round_up(n, tn)
    else:
        n_pad = n
    num_n = n_pad // tn
    needs_mask = n_pad != n

    # ---- batch tiling: size by bytes, not rows ------------------------------
    if tb is None:
        tb = max(512, (target_tile_bytes // max(1, tn * x_isz)) // 512 * 512)
        tb = min(tb, _round_up(B, 512))
        if B > 512:
            # Keep >= 2 batch steps so the "parallel" axis can shard across the
            # two TensorCores on v7x (no-op on single-TC v5e/v6e).
            tb = min(tb, _round_up(_cdiv(B, 2), 512))
    else:
        tb = max(128, _round_up(tb, 128))

    def _vmem_estimate(tb_):
        return (2 * tb_ * tn * x_isz                  # double-buffered x tiles
                + 2 * (tn * k * v_isz + tn * 4)       # V block + v2sum block
                + 2 * tb_ * tn * 4                    # xf / x2 f32 temporaries
                + 3 * tb_ * k * 4                     # x@V, its square, accumulator
                + 2 * tb_ * 4                         # pow accumulator / sum row
                + 2 * tb_ * out_isz)                  # output row blocks

    while tb > 512 and _vmem_estimate(tb) > vmem_budget_bytes:
        tb -= 512

    num_b = _cdiv(B, tb)
    grid = (num_b, num_n)

    x_tile_bytes = tb * tn * x_isz
    deep_x = x_tile_bytes < (1 << 20) and num_b * num_n >= 4   # hide DMA latency
    single_buf_resident = num_n == 1 and tn * k * v_isz >= (256 << 10)

    if vmem_limit_bytes is None:
        vmem_limit_bytes = int(min(vmem_budget_bytes + (16 << 20),
                                   max(32 << 20, _vmem_estimate(tb) + (8 << 20))))

    # ---- hoisted, param-sized preprocessing (x itself is never copied) ------
    # sum_k V^2 as an f32 row: replaces the entire (x^2) @ (V^2) matmul.
    v2sum = jnp.sum(V.astype(jnp.float32) ** 2, axis=1)[None, :]         # (1, n)
    if n_pad != n:
        V_in = jnp.pad(V, ((0, n_pad - n), (0, 0)))          # zeros -> no effect
        v2sum = jnp.pad(v2sum, ((0, 0), (0, n_pad - n)))
    else:
        V_in = V

    def _spec(shape, index_map, buffers=None):
        if buffers is None:
            return pl.BlockSpec(shape, index_map)
        return pl.BlockSpec(shape, index_map, pipeline_mode=pl.Buffered(buffers))

    in_specs = [
        _spec((tb, tn), lambda i, j: (i, j), 3 if deep_x else None),   # x tiles
        _spec((tn, k), lambda i, j: (j, 0),                            # V
              1 if single_buf_resident else None),
        _spec((1, tn), lambda i, j: (0, j),                            # sum_k V^2
              1 if single_buf_resident else None),
    ]
    out_spec = pl.BlockSpec((1, tb), lambda i, j: (0, i))   # lane-dense, resident over j

    cost = pl.CostEstimate(
        flops=int(2 * B * n * k + 2 * B * n + 2 * B * k + 4 * B * n),
        transcendentals=0,
        bytes_accessed=int(B * n * x_isz + n_pad * k * v_isz + n_pad * 4
                           + B * out_isz),
    )

    out_row = pl.pallas_call(
        _make_fm_kernel(n, tn, needs_mask),
        out_shape=jax.ShapeDtypeStruct((1, num_b * tb), out_dtype),
        grid_spec=pltpu.PrefetchScalarGridSpec(
            num_scalar_prefetch=0,
            grid=grid,
            in_specs=in_specs,
            out_specs=out_spec,
            scratch_shapes=[pltpu.VMEM((tb, k), jnp.float32),   # x @ V accumulator
                            pltpu.VMEM((1, tb), jnp.float32)],  # pow-sum accumulator
        ),
        compiler_params=pltpu.CompilerParams(
            dimension_semantics=("parallel", "arbitrary"),
            vmem_limit_bytes=vmem_limit_bytes,
        ),
        cost_estimate=cost,
    )(x, V_in, v2sum)

    return out_row[0, :B][:, None]


def fm_reference(x, V):
    """Direct port of the PyTorch forward pass."""
    temp = x @ V
    pow_sum = (x * x) @ (V * V)
    return 0.5 * jnp.sum(temp * temp - pow_sum, axis=1, keepdims=True)


if __name__ == "__main__":
    key = jax.random.PRNGKey(0)
    k1, k2, k3, k4 = jax.random.split(key, 4)

    # Case 1: small FM (B=500, n=64, k=16), default byte-sized batch tile ->
    # single-step grid, no padding of x anywhere.
    B, n, k = 500, 64, 16
    x = jax.random.normal(k1, (B, n), dtype=jnp.float32)
    V = jax.random.uniform(k2, (n, k), dtype=jnp.float32, minval=-0.1, maxval=0.1)
    ref = fm_reference(x, V)
    out = jax.block_until_ready(factorization_machine(x, V))
    assert out.shape == (B, 1)
    assert jnp.allclose(out, ref, atol=1e-4, rtol=1e-4), float(jnp.max(jnp.abs(out - ref)))

    # Case 2: forced small batch tile -> multi-step "parallel" batch grid with a
    # partial (un-padded) last tile; garbage rows stay confined to sliced output.
    out2 = jax.block_until_ready(factorization_machine(x, V, tb=256))
    assert out2.shape == (B, 1)
    assert jnp.allclose(out2, ref, atol=1e-4, rtol=1e-4), float(jnp.max(jnp.abs(out2 - ref)))

    # Case 3: feature-dim tiling ("arbitrary" reduction axis) with ragged n
    # (n % tn != 0 exercises the in-kernel column mask + zero-padded V).
    B3, n3, k3d = 300, 300, 16
    x3 = jax.random.normal(k3, (B3, n3), dtype=jnp.float32)
    V3 = jax.random.uniform(k4, (n3, k3d), dtype=jnp.float32, minval=-0.1, maxval=0.1)
    ref3 = fm_reference(x3, V3)
    out3 = jax.block_until_ready(factorization_machine(x3, V3, tn=128))
    assert out3.shape == (B3, 1)
    assert jnp.allclose(out3, ref3, atol=5e-4, rtol=5e-4), float(jnp.max(jnp.abs(out3 - ref3)))

    print("KERNEL_OK")
</pallas_src>

<mosaic_0001>
module attributes {stable_mosaic.version = 11 : i64} {
  func.func @fm_kernel(%arg0: i32, %arg1: i32, %arg2: memref<512x64xf32, #tpu.memory_space<vmem>>, %arg3: memref<64x16xf32, #tpu.memory_space<vmem>>, %arg4: memref<1x64xf32, #tpu.memory_space<vmem>>, %arg5: memref<1x512xf32, #tpu.memory_space<vmem>>, %arg6: memref<512x16xf32, #tpu.memory_space<vmem>>, %arg7: memref<1x512xf32, #tpu.memory_space<vmem>>) attributes {dimension_semantics = [#tpu.dimension_semantics<parallel>, #tpu.dimension_semantics<arbitrary>], iteration_bounds = array<i64: 1, 1>, scalar_prefetch = 0 : i64, scratch_operands = 2 : i64, tpu.core_type = #tpu.core_type<tc>, window_params = [{transform_indices = @transform_0, window_bounds = array<i64: 512, 64>}, {transform_indices = @transform_1, window_bounds = array<i64: 64, 16>}, {transform_indices = @transform_2, window_bounds = array<i64: 1, 64>}, {transform_indices = @transform_3, window_bounds = array<i64: 1, 512>}]} {
    %c0_i32 = arith.constant 0 : i32
    %0 = arith.cmpi eq, %arg1, %c0_i32 : i32
    %1 = arith.extui %0 : i1 to i32
    %c0_i32_0 = arith.constant 0 : i32
    %2 = arith.cmpi ne, %1, %c0_i32_0 : i32
    scf.if %2 {
      %cst_17 = arith.constant 0.000000e+00 : f32
      %18 = vector.broadcast %cst_17 : f32 to vector<512x16xf32>
      %c0_18 = arith.constant 0 : index
      %c0_19 = arith.constant 0 : index
      %19 = vector.load %arg6[%c0_18, %c0_19] : memref<512x16xf32, #tpu.memory_space<vmem>>, vector<512x16xf32>
      tpu.vector_store %arg6[%c0_18, %c0_19], %18 {strides = array<i32>} : memref<512x16xf32, #tpu.memory_space<vmem>>, vector<512x16xf32>,
      %cst_20 = arith.constant 0.000000e+00 : f32
      %20 = vector.broadcast %cst_20 : f32 to vector<1x512xf32>
      %c0_21 = arith.constant 0 : index
      %c0_22 = arith.constant 0 : index
      %21 = vector.load %arg7[%c0_21, %c0_22] : memref<1x512xf32, #tpu.memory_space<vmem>>, vector<1x512xf32>
      tpu.vector_store %arg7[%c0_21, %c0_22], %20 {strides = array<i32>} : memref<1x512xf32, #tpu.memory_space<vmem>>, vector<1x512xf32>,
    } else {
    }
    %c0 = arith.constant 0 : index
    %c0_1 = arith.constant 0 : index
    %3 = vector.load %arg2[%c0, %c0_1] : memref<512x64xf32, #tpu.memory_space<vmem>>, vector<512x64xf32>
    %c0_2 = arith.constant 0 : index
    %c0_3 = arith.constant 0 : index
    %4 = vector.load %arg6[%c0_2, %c0_3] : memref<512x16xf32, #tpu.memory_space<vmem>>, vector<512x16xf32>
    %c0_4 = arith.constant 0 : index
    %c0_5 = arith.constant 0 : index
    %5 = vector.load %arg3[%c0_4, %c0_5] : memref<64x16xf32, #tpu.memory_space<vmem>>, vector<64x16xf32>
    %cst = arith.constant dense<0.000000e+00> : vector<512x16xf32>
    %6 = tpu.matmul %3, %5, %cst {dimension_numbers = #tpu.dot_dimension_numbers<[1], [0], [0], [1], [0, 0, 1, 1], [], []>} : vector<512x64xf32>, vector<64x16xf32>, vector<512x16xf32> -> vector<512x16xf32>
    %7 = arith.addf %4, %6 : vector<512x16xf32>
    %c0_6 = arith.constant 0 : index
    %c0_7 = arith.constant 0 : index
    %8 = vector.load %arg6[%c0_6, %c0_7] : memref<512x16xf32, #tpu.memory_space<vmem>>, vector<512x16xf32>
    tpu.vector_store %arg6[%c0_6, %c0_7], %7 {strides = array<i32>} : memref<512x16xf32, #tpu.memory_space<vmem>>, vector<512x16xf32>,
    %9 = arith.mulf %3, %3 : vector<512x64xf32>
    %c0_8 = arith.constant 0 : index
    %c0_9 = arith.constant 0 : index
    %10 = vector.load %arg7[%c0_8, %c0_9] : memref<1x512xf32, #tpu.memory_space<vmem>>, vector<1x512xf32>
    %c0_10 = arith.constant 0 : index
    %c0_11 = arith.constant 0 : index
    %11 = vector.load %arg4[%c0_10, %c0_11] : memref<1x64xf32, #tpu.memory_space<vmem>>, vector<1x64xf32>
    "tpu.trace_start"() <{level = 10 : i32, message = "zn,bn->zb"}> : () -> ()
    %cst_12 = arith.constant dense<0.000000e+00> : vector<1x512xf32>
    %12 = tpu.matmul %11, %9, %cst_12 {dimension_numbers = #tpu.dot_dimension_numbers<[1], [1], [0], [0], [0, 0, 1, 0], [], []>} : vector<1x64xf32>, vector<512x64xf32>, vector<1x512xf32> -> vector<1x512xf32>
    "tpu.trace_stop"() : () -> ()
    %13 = arith.addf %10, %12 : vector<1x512xf32>
    %c0_13 = arith.constant 0 : index
    %c0_14 = arith.constant 0 : index
    %14 = vector.load %arg7[%c0_13, %c0_14] : memref<1x512xf32, #tpu.memory_space<vmem>>, vector<1x512xf32>
    tpu.vector_store %arg7[%c0_13, %c0_14], %13 {strides = array<i32>} : memref<1x512xf32, #tpu.memory_space<vmem>>, vector<1x512xf32>,
    %c0_i32_15 = arith.constant 0 : i32
    %15 = arith.cmpi eq, %arg1, %c0_i32_15 : i32
    %16 = arith.extui %15 : i1 to i32
    %c0_i32_16 = arith.constant 0 : i32
    %17 = arith.cmpi ne, %16, %c0_i32_16 : i32
    scf.if %17 {
      %c0_17 = arith.constant 0 : index
      %c0_18 = arith.constant 0 : index
      %18 = vector.load %arg6[%c0_17, %c0_18] : memref<512x16xf32, #tpu.memory_space<vmem>>, vector<512x16xf32>
      %19 = arith.mulf %18, %18 : vector<512x16xf32>
      %cst_19 = arith.constant 1.000000e+00 : f32
      %20 = vector.broadcast %cst_19 : f32 to vector<1x16xf32>
      "tpu.trace_start"() <{level = 10 : i32, message = "zk,bk->zb"}> : () -> ()
      %cst_20 = arith.constant dense<0.000000e+00> : vector<1x512xf32>
      %21 = tpu.matmul %20, %19, %cst_20 {dimension_numbers = #tpu.dot_dimension_numbers<[1], [1], [0], [0], [0, 0, 1, 0], [], []>} : vector<1x16xf32>, vector<512x16xf32>, vector<1x512xf32> -> vector<1x512xf32>
      "tpu.trace_stop"() : () -> ()
      %c0_21 = arith.constant 0 : index
      %c0_22 = arith.constant 0 : index
      %22 = vector.load %arg7[%c0_21, %c0_22] : memref<1x512xf32, #tpu.memory_space<vmem>>, vector<1x512xf32>
      %23 = arith.subf %21, %22 : vector<1x512xf32>
      %cst_23 = arith.constant 5.000000e-01 : f32
      %24 = vector.broadcast %cst_23 : f32 to vector<1x512xf32>
      %25 = arith.mulf %24, %23 : vector<1x512xf32>
      %c0_24 = arith.constant 0 : index
      %c0_25 = arith.constant 0 : index
      %26 = vector.load %arg5[%c0_24, %c0_25] : memref<1x512xf32, #tpu.memory_space<vmem>>, vector<1x512xf32>
      tpu.vector_store %arg5[%c0_24, %c0_25], %25 {strides = array<i32>} : memref<1x512xf32, #tpu.memory_space<vmem>>, vector<1x512xf32>,
    } else {
    }
    return
  }
  func.func @transform_0(%arg0: i32, %arg1: i32) -> (i32, i32) {
    %c0_i32 = arith.constant 0 : i32
    return %arg0, %arg1 : i32, i32
  }
  func.func @transform_1(%arg0: i32, %arg1: i32) -> (i32, i32) {
    %c0_i32 = arith.constant 0 : i32
    %c0_i32_0 = arith.constant 0 : i32
    return %arg1, %c0_i32 : i32, i32
  }
  func.func @transform_2(%arg0: i32, %arg1: i32) -> (i32, i32) {
    %c0_i32 = arith.constant 0 : i32
    %c0_i32_0 = arith.constant 0 : i32
    return %c0_i32, %arg1 : i32, i32
  }
  func.func @transform_3(%arg0: i32, %arg1: i32) -> (i32, i32) {
    %c0_i32 = arith.constant 0 : i32
    %c0_i32_0 = arith.constant 0 : i32
    return %c0_i32, %arg0 : i32, i32
  }
}

</mosaic_0001>

<llo_original>
// kernel: tpu_custom_call.1
$region0: #{tpu_custom_call.1}
  #allocation0 [shape = 'u32[]', space=smem, size = 0x4, offset = 0x4, fixed_abs, tag = 'smem constant byte address 0x4 - core index']
  #allocation1 [shape = 'u32[144,128]{1,0:T(1,128)}', space=vmem, size = 0x12000, scoped, tag = 'internal scratch']
  #allocation2 [shape = 'f32[512,16]{1,0:T(8,128)}', space=vmem, size = 0x40000, scoped, tag = 'scratch operand']
  #allocation3 [shape = 'f32[1,512]{1,0:T(1,128)}', space=vmem, size = 0x800, scoped, tag = 'scratch operand']
  %s0 = inlined_call_operand.vmem [shape: f32[500,64], index: 0, kind: input, shape index: {}]
  %s1 = inlined_call_operand.vmem [shape: f32[64,16], index: 1, kind: input, shape index: {}]
  %s2 = inlined_call_operand.vmem [shape: f32[1,64], index: 2, kind: input, shape index: {}]
  %s3 = inlined_call_operand.hbm [shape: f32[1,512], index: 3, kind: output, shape index: {}]
  %s4 = sld [smem:[#allocation0]]
  $region30: #{tpu_custom_call.1} parent=0
    _
  %s6 = ssub.s32 1, %s4
  %s7 = scalar_select 0, %s6, %s4
  $region1: #{tpu_custom_call.1} parent=0
    #allocation4 [shape = 'u8[2048]{0}', space=vmem, size = 0x800, scoped, tag = 'output window, operand 0, single buffered']
    #allocation5 [shape = 's32[1]{0}', space=sflag, size = 0x4, scoped, tag = 'scoped memory for tpu_custom_call.1']
    %8 = vsyncpa [#allocation5], 0
    // Predicated region
    $region2: #{tpu_custom_call.1} parent=1 // pred_check
      _
    $region3: #{tpu_custom_call.1} parent=1 // pred_check_branch
      %10 = sbr.rel (0) target = $region5
    $region4: #{tpu_custom_call.1} parent=1 // pred_region
      _
    $region5: #{tpu_custom_call.1} parent=1 // pred_fallthru
      _
    // Predicated region
    $region6: #{tpu_custom_call.1} parent=1 // pred_check
      _
    $region7: #{tpu_custom_call.1} parent=1 // pred_check_branch
      %12 = sbr.rel (0) target = $region9
    $region8: #{tpu_custom_call.1} parent=1 // pred_region
      _
    $region9: #{tpu_custom_call.1} parent=1 // pred_fallthru
      _
    // Predicated region
    $region10: #{tpu_custom_call.1} parent=1 // pred_check
      _
    $region11: #{tpu_custom_call.1} parent=1 // pred_check_branch
      %14 = sbr.rel (0) target = $region13
    $region12: #{tpu_custom_call.1} parent=1 // pred_region
      _
    $region13: #{tpu_custom_call.1} parent=1 // pred_fallthru
      _
    %p15 = scmp.eq.s32.totalorder 0, 0
    // Predicated region
    $region14: #{tpu_custom_call.1} parent=1 // pred_check
      %p16 = pneg %p15
    $region15: #{tpu_custom_call.1} parent=1 // pred_check_branch
      %18 = sbr.rel (%p16) target = $region17
    $region16: #{tpu_custom_call.1} parent=1 // pred_region
      %vm19 = vcmask 130048
      %20 = vst.msk [vmem:[#allocation2] sm:$0xff] %vm19, 0.0
      %21 = vst.msk [vmem:[#allocation2 + $0x8] sm:$0xff] %vm19, 0.0
      %22 = vst.msk [vmem:[#allocation2 + $0x10] sm:$0xff] %vm19, 0.0
      %23 = vst.msk [vmem:[#allocation2 + $0x18] sm:$0xff] %vm19, 0.0
      %24 = vst.msk [vmem:[#allocation2 + $0x20] sm:$0xff] %vm19, 0.0
      %25 = vst.msk [vmem:[#allocation2 + $0x28] sm:$0xff] %vm19, 0.0
      %26 = vst.msk [vmem:[#allocation2 + $0x30] sm:$0xff] %vm19, 0.0
      %27 = vst.msk [vmem:[#allocation2 + $0x38] sm:$0xff] %vm19, 0.0
      %28 = vst.msk [vmem:[#allocation2 + $0x40] sm:$0xff] %vm19, 0.0
      %29 = vst.msk [vmem:[#allocation2 + $0x48] sm:$0xff] %vm19, 0.0
      %30 = vst.msk [vmem:[#allocation2 + $0x50] sm:$0xff] %vm19, 0.0
      %31 = vst.msk [vmem:[#allocation2 + $0x58] sm:$0xff] %vm19, 0.0
      %32 = vst.msk [vmem:[#allocation2 + $0x60] sm:$0xff] %vm19, 0.0
      %33 = vst.msk [vmem:[#allocation2 + $0x68] sm:$0xff] %vm19, 0.0
      %34 = vst.msk [vmem:[#allocation2 + $0x70] sm:$0xff] %vm19, 0.0
      %35 = vst.msk [vmem:[#allocation2 + $0x78] sm:$0xff] %vm19, 0.0
      %36 = vst.msk [vmem:[#allocation2 + $0x80] sm:$0xff] %vm19, 0.0
      %37 = vst.msk [vmem:[#allocation2 + $0x88] sm:$0xff] %vm19, 0.0
      %38 = vst.msk [vmem:[#allocation2 + $0x90] sm:$0xff] %vm19, 0.0
      %39 = vst.msk [vmem:[#allocation2 + $0x98] sm:$0xff] %vm19, 0.0
      %40 = vst.msk [vmem:[#allocation2 + $0xa0] sm:$0xff] %vm19, 0.0
      %41 = vst.msk [vmem:[#allocation2 + $0xa8] sm:$0xff] %vm19, 0.0
      %42 = vst.msk [vmem:[#allocation2 + $0xb0] sm:$0xff] %vm19, 0.0
      %43 = vst.msk [vmem:[#allocation2 + $0xb8] sm:$0xff] %vm19, 0.0
      %44 = vst.msk [vmem:[#allocation2 + $0xc0] sm:$0xff] %vm19, 0.0
      %45 = vst.msk [vmem:[#allocation2 + $0xc8] sm:$0xff] %vm19, 0.0
      %46 = vst.msk [vmem:[#allocation2 + $0xd0] sm:$0xff] %vm19, 0.0
      %47 = vst.msk [vmem:[#allocation2 + $0xd8] sm:$0xff] %vm19, 0.0
      %48 = vst.msk [vmem:[#allocation2 + $0xe0] sm:$0xff] %vm19, 0.0
      %49 = vst.msk [vmem:[#allocation2 + $0xe8] sm:$0xff] %vm19, 0.0
      %50 = vst.msk [vmem:[#allocation2 + $0xf0] sm:$0xff] %vm19, 0.0
      %51 = vst.msk [vmem:[#allocation2 + $0xf8] sm:$0xff] %vm19, 0.0
      %52 = vst.msk [vmem:[#allocation2 + $0x100] sm:$0xff] %vm19, 0.0
      %53 = vst.msk [vmem:[#allocation2 + $0x108] sm:$0xff] %vm19, 0.0
      %54 = vst.msk [vmem:[#allocation2 + $0x110] sm:$0xff] %vm19, 0.0
      %55 = vst.msk [vmem:[#allocation2 + $0x118] sm:$0xff] %vm19, 0.0
      %56 = vst.msk [vmem:[#allocation2 + $0x120] sm:$0xff] %vm19, 0.0
      %57 = vst.msk [vmem:[#allocation2 + $0x128] sm:$0xff] %vm19, 0.0
      %58 = vst.msk [vmem:[#allocation2 + $0x130] sm:$0xff] %vm19, 0.0
      %59 = vst.msk [vmem:[#allocation2 + $0x138] sm:$0xff] %vm19, 0.0
      %60 = vst.msk [vmem:[#allocation2 + $0x140] sm:$0xff] %vm19, 0.0
      %61 = vst.msk [vmem:[#allocation2 + $0x148] sm:$0xff] %vm19, 0.0
      %62 = vst.msk [vmem:[#allocation2 + $0x150] sm:$0xff] %vm19, 0.0
      %63 = vst.msk [vmem:[#allocation2 + $0x158] sm:$0xff] %vm19, 0.0
      %64 = vst.msk [vmem:[#allocation2 + $0x160] sm:$0xff] %vm19, 0.0
      %65 = vst.msk [vmem:[#allocation2 + $0x168] sm:$0xff] %vm19, 0.0
      %66 = vst.msk [vmem:[#allocation2 + $0x170] sm:$0xff] %vm19, 0.0
      %67 = vst.msk [vmem:[#allocation2 + $0x178] sm:$0xff] %vm19, 0.0
      %68 = vst.msk [vmem:[#allocation2 + $0x180] sm:$0xff] %vm19, 0.0
      %69 = vst.msk [vmem:[#allocation2 + $0x188] sm:$0xff] %vm19, 0.0
      %70 = vst.msk [vmem:[#allocation2 + $0x190] sm:$0xff] %vm19, 0.0
      %71 = vst.msk [vmem:[#allocation2 + $0x198] sm:$0xff] %vm19, 0.0
      %72 = vst.msk [vmem:[#allocation2 + $0x1a0] sm:$0xff] %vm19, 0.0
      %73 = vst.msk [vmem:[#allocation2 + $0x1a8] sm:$0xff] %vm19, 0.0
      %74 = vst.msk [vmem:[#allocation2 + $0x1b0] sm:$0xff] %vm19, 0.0
      %75 = vst.msk [vmem:[#allocation2 + $0x1b8] sm:$0xff] %vm19, 0.0
      %76 = vst.msk [vmem:[#allocation2 + $0x1c0] sm:$0xff] %vm19, 0.0
      %77 = vst.msk [vmem:[#allocation2 + $0x1c8] sm:$0xff] %vm19, 0.0
      %78 = vst.msk [vmem:[#allocation2 + $0x1d0] sm:$0xff] %vm19, 0.0
      %79 = vst.msk [vmem:[#allocation2 + $0x1d8] sm:$0xff] %vm19, 0.0
      %80 = vst.msk [vmem:[#allocation2 + $0x1e0] sm:$0xff] %vm19, 0.0
      %81 = vst.msk [vmem:[#allocation2 + $0x1e8] sm:$0xff] %vm19, 0.0
      %82 = vst.msk [vmem:[#allocation2 + $0x1f0] sm:$0xff] %vm19, 0.0
      %83 = vst.msk [vmem:[#allocation2 + $0x1f8] sm:$0xff] %vm19, 0.0
      %v84 = vlaneseq
      %vm85 = vcmp.ge.s32.totalorder %v84, 0
      %vm86 = vcmp.lt.s32.totalorder %v84, 512
      %vm87 = vmand %vm85, %vm86
      %88 = vst.msk [vmem:[#allocation3] sm:$0xf] %vm87, 0.0
    $region17: #{tpu_custom_call.1} parent=1 // pred_fallthru
      _
    %v89 = vld [vmem:[%s0] sm:$0xff]
    %v90 = vld [vmem:[%s0 + $0x8] sm:$0xff]
    %v91 = vld [vmem:[%s0 + $0x10] sm:$0xff]
    %v92 = vld [vmem:[%s0 + $0x18] sm:$0xff]
    %v93 = vld [vmem:[%s0 + $0x20] sm:$0xff]
    %v94 = vld [vmem:[%s0 + $0x28] sm:$0xff]
    %v95 = vld [vmem:[%s0 + $0x30] sm:$0xff]
    %v96 = vld [vmem:[%s0 + $0x38] sm:$0xff]
    %v97 = vld [vmem:[%s0 + $0x40] sm:$0xff]
    %v98 = vld [vmem:[%s0 + $0x48] sm:$0xff]
    %v99 = vld [vmem:[%s0 + $0x50] sm:$0xff]
    %v100 = vld [vmem:[%s0 + $0x58] sm:$0xff]
    %v101 = vld [vmem:[%s0 + $0x60] sm:$0xff]
    %v102 = vld [vmem:[%s0 + $0x68] sm:$0xff]
    %v103 = vld [vmem:[%s0 + $0x70] sm:$0xff]
    %v104 = vld [vmem:[%s0 + $0x78] sm:$0xff]
    %v105 = vld [vmem:[%s0 + $0x80] sm:$0xff]
    %v106 = vld [vmem:[%s0 + $0x88] sm:$0xff]
    %v107 = vld [vmem:[%s0 + $0x90] sm:$0xff]
    %v108 = vld [vmem:[%s0 + $0x98] sm:$0xff]
    %v109 = vld [vmem:[%s0 + $0xa0] sm:$0xff]
    %v110 = vld [vmem:[%s0 + $0xa8] sm:$0xff]
    %v111 = vld [vmem:[%s0 + $0xb0] sm:$0xff]
    %v112 = vld [vmem:[%s0 + $0xb8] sm:$0xff]
    %v113 = vld [vmem:[%s0 + $0xc0] sm:$0xff]
    %v114 = vld [vmem:[%s0 + $0xc8] sm:$0xff]
    %v115 = vld [vmem:[%s0 + $0xd0] sm:$0xff]
    %v116 = vld [vmem:[%s0 + $0xd8] sm:$0xff]
    %v117 = vld [vmem:[%s0 + $0xe0] sm:$0xff]
    %v118 = vld [vmem:[%s0 + $0xe8] sm:$0xff]
    %v119 = vld [vmem:[%s0 + $0xf0] sm:$0xff]
    %v120 = vld [vmem:[%s0 + $0xf8] sm:$0xff]
    %v121 = vld [vmem:[%s0 + $0x100] sm:$0xff]
    %v122 = vld [vmem:[%s0 + $0x108] sm:$0xff]
    %v123 = vld [vmem:[%s0 + $0x110] sm:$0xff]
    %v124 = vld [vmem:[%s0 + $0x118] sm:$0xff]
    %v125 = vld [vmem:[%s0 + $0x120] sm:$0xff]
    %v126 = vld [vmem:[%s0 + $0x128] sm:$0xff]
    %v127 = vld [vmem:[%s0 + $0x130] sm:$0xff]
    %v128 = vld [vmem:[%s0 + $0x138] sm:$0xff]
    %v129 = vld [vmem:[%s0 + $0x140] sm:$0xff]
    %v130 = vld [vmem:[%s0 + $0x148] sm:$0xff]
    %v131 = vld [vmem:[%s0 + $0x150] sm:$0xff]
    %v132 = vld [vmem:[%s0 + $0x158] sm:$0xff]
    %v133 = vld [vmem:[%s0 + $0x160] sm:$0xff]
    %v134 = vld [vmem:[%s0 + $0x168] sm:$0xff]
    %v135 = vld [vmem:[%s0 + $0x170] sm:$0xff]
    %v136 = vld [vmem:[%s0 + $0x178] sm:$0xff]
    %v137 = vld [vmem:[%s0 + $0x180] sm:$0xff]
    %v138 = vld [vmem:[%s0 + $0x188] sm:$0xff]
    %v139 = vld [vmem:[%s0 + $0x190] sm:$0xff]
    %v140 = vld [vmem:[%s0 + $0x198] sm:$0xff]
    %v141 = vld [vmem:[%s0 + $0x1a0] sm:$0xff]
    %v142 = vld [vmem:[%s0 + $0x1a8] sm:$0xff]
    %v143 = vld [vmem:[%s0 + $0x1b0] sm:$0xff]
    %v144 = vld [vmem:[%s0 + $0x1b8] sm:$0xff]
    %v145 = vld [vmem:[%s0 + $0x1c0] sm:$0xff]
    %v146 = vld [vmem:[%s0 + $0x1c8] sm:$0xff]
    %v147 = vld [vmem:[%s0 + $0x1d0] sm:$0xff]
    %v148 = vld [vmem:[%s0 + $0x1d8] sm:$0xff]
    %v149 = vld [vmem:[%s0 + $0x1e0] sm:$0xff]
    %v150 = vld [vmem:[%s0 + $0x1e8] sm:$0xff]
    %v151 = vld [vmem:[%s0 + $0x1f0] sm:$0xff]
    %v152 = vld [vmem:[%s0 + $0x1f8] sm:$0xff]
    %v153 = vld [vmem:[#allocation2] sm:$0xff]
    %v154 = vld [vmem:[#allocation2 + $0x8] sm:$0xff]
    %v155 = vld [vmem:[#allocation2 + $0x10] sm:$0xff]
    %v156 = vld [vmem:[#allocation2 + $0x18] sm:$0xff]
    %v157 = vld [vmem:[#allocation2 + $0x20] sm:$0xff]
    %v158 = vld [vmem:[#allocation2 + $0x28] sm:$0xff]
    %v159 = vld [vmem:[#allocation2 + $0x30] sm:$0xff]
    %v160 = vld [vmem:[#allocation2 + $0x38] sm:$0xff]
    %v161 = vld [vmem:[#allocation2 + $0x40] sm:$0xff]
    %v162 = vld [vmem:[#allocation2 + $0x48] sm:$0xff]
    %v163 = vld [vmem:[#allocation2 + $0x50] sm:$0xff]
    %v164 = vld [vmem:[#allocation2 + $0x58] sm:$0xff]
    %v165 = vld [vmem:[#allocation2 + $0x60] sm:$0xff]
    %v166 = vld [vmem:[#allocation2 + $0x68] sm:$0xff]
    %v167 = vld [vmem:[#allocation2 + $0x70] sm:$0xff]
    %v168 = vld [vmem:[#allocation2 + $0x78] sm:$0xff]
    %v169 = vld [vmem:[#allocation2 + $0x80] sm:$0xff]
    %v170 = vld [vmem:[#allocation2 + $0x88] sm:$0xff]
    %v171 = vld [vmem:[#allocation2 + $0x90] sm:$0xff]
    %v172 = vld [vmem:[#allocation2 + $0x98] sm:$0xff]
    %v173 = vld [vmem:[#allocation2 + $0xa0] sm:$0xff]
    %v174 = vld [vmem:[#allocation2 + $0xa8] sm:$0xff]
    %v175 = vld [vmem:[#allocation2 + $0xb0] sm:$0xff]
    %v176 = vld [vmem:[#allocation2 + $0xb8] sm:$0xff]
    %v177 = vld [vmem:[#allocation2 + $0xc0] sm:$0xff]
    %v178 = vld [vmem:[#allocation2 + $0xc8] sm:$0xff]
    %v179 = vld [vmem:[#allocation2 + $0xd0] sm:$0xff]
    %v180 = vld [vmem:[#allocation2 + $0xd8] sm:$0xff]
    %v181 = vld [vmem:[#allocation2 + $0xe0] sm:$0xff]
    %v182 = vld [vmem:[#allocation2 + $0xe8] sm:$0xff]
    %v183 = vld [vmem:[#allocation2 + $0xf0] sm:$0xff]
    %v184 = vld [vmem:[#allocation2 + $0xf8] sm:$0xff]
    %v185 = vld [vmem:[#allocation2 + $0x100] sm:$0xff]
    %v186 = vld [vmem:[#allocation2 + $0x108] sm:$0xff]
    %v187 = vld [vmem:[#allocation2 + $0x110] sm:$0xff]
    %v188 = vld [vmem:[#allocation2 + $0x118] sm:$0xff]
    %v189 = vld [vmem:[#allocation2 + $0x120] sm:$0xff]
    %v190 = vld [vmem:[#allocation2 + $0x128] sm:$0xff]
    %v191 = vld [vmem:[#allocation2 + $0x130] sm:$0xff]
    %v192 = vld [vmem:[#allocation2 + $0x138] sm:$0xff]
    %v193 = vld [vmem:[#allocation2 + $0x140] sm:$0xff]
    %v194 = vld [vmem:[#allocation2 + $0x148] sm:$0xff]
    %v195 = vld [vmem:[#allocation2 + $0x150] sm:$0xff]
    %v196 = vld [vmem:[#allocation2 + $0x158] sm:$0xff]
    %v197 = vld [vmem:[#allocation2 + $0x160] sm:$0xff]
    %v198 = vld [vmem:[#allocation2 + $0x168] sm:$0xff]
    %v199 = vld [vmem:[#allocation2 + $0x170] sm:$0xff]
    %v200 = vld [vmem:[#allocation2 + $0x178] sm:$0xff]
    %v201 = vld [vmem:[#allocation2 + $0x180] sm:$0xff]
    %v202 = vld [vmem:[#allocation2 + $0x188] sm:$0xff]
    %v203 = vld [vmem:[#allocation2 + $0x190] sm:$0xff]
    %v204 = vld [vmem:[#allocation2 + $0x198] sm:$0xff]
    %v205 = vld [vmem:[#allocation2 + $0x1a0] sm:$0xff]
    %v206 = vld [vmem:[#allocation2 + $0x1a8] sm:$0xff]
    %v207 = vld [vmem:[#allocation2 + $0x1b0] sm:$0xff]
    %v208 = vld [vmem:[#allocation2 + $0x1b8] sm:$0xff]
    %v209 = vld [vmem:[#allocation2 + $0x1c0] sm:$0xff]
    %v210 = vld [vmem:[#allocation2 + $0x1c8] sm:$0xff]
    %v211 = vld [vmem:[#allocation2 + $0x1d0] sm:$0xff]
    %v212 = vld [vmem:[#allocation2 + $0x1d8] sm:$0xff]
    %v213 = vld [vmem:[#allocation2 + $0x1e0] sm:$0xff]
    %v214 = vld [vmem:[#allocation2 + $0x1e8] sm:$0xff]
    %v215 = vld [vmem:[#allocation2 + $0x1f0] sm:$0xff]
    %v216 = vld [vmem:[#allocation2 + $0x1f8] sm:$0xff]
    %v217 = vld [vmem:[%s1] sm:$0xff]
    %v218 = vld [vmem:[%s1 + $0x8] sm:$0xff]
    %v219 = vld [vmem:[%s1 + $0x10] sm:$0xff]
    %v220 = vld [vmem:[%s1 + $0x18] sm:$0xff]
    %v221 = vld [vmem:[%s1 + $0x20] sm:$0xff]
    %v222 = vld [vmem:[%s1 + $0x28] sm:$0xff]
    %v223 = vld [vmem:[%s1 + $0x30] sm:$0xff]
    %v224 = vld [vmem:[%s1 + $0x38] sm:$0xff]
    %vm225 = vcmask 523264
    %v227 = vsel %vm225, %v89, 0
    %v230 = vsel %vm225, %v90, 0
    %v233 = vsel %vm225, %v91, 0
    %v236 = vsel %vm225, %v92, 0
    %v239 = vsel %vm225, %v93, 0
    %v242 = vsel %vm225, %v94, 0
    %v245 = vsel %vm225, %v95, 0
    %v248 = vsel %vm225, %v96, 0
    %v251 = vsel %vm225, %v97, 0
    %v254 = vsel %vm225, %v98, 0
    %v257 = vsel %vm225, %v99, 0
    %v260 = vsel %vm225, %v100, 0
    %v263 = vsel %vm225, %v101, 0
    %v266 = vsel %vm225, %v102, 0
    %v269 = vsel %vm225, %v103, 0
    %v272 = vsel %vm225, %v104, 0
    %v275 = vsel %vm225, %v105, 0
    %v278 = vsel %vm225, %v106, 0
    %v281 = vsel %vm225, %v107, 0
    %v284 = vsel %vm225, %v108, 0
    %v287 = vsel %vm225, %v109, 0
    %v290 = vsel %vm225, %v110, 0
    %v293 = vsel %vm225, %v111, 0
    %v296 = vsel %vm225, %v112, 0
    %v299 = vsel %vm225, %v113, 0
    %v302 = vsel %vm225, %v114, 0
    %v305 = vsel %vm225, %v115, 0
    %v308 = vsel %vm225, %v116, 0
    %v311 = vsel %vm225, %v117, 0
    %v314 = vsel %vm225, %v118, 0
    %v317 = vsel %vm225, %v119, 0
    %v320 = vsel %vm225, %v120, 0
    %v323 = vsel %vm225, %v121, 0
    %v326 = vsel %vm225, %v122, 0
    %v329 = vsel %vm225, %v123, 0
    %v332 = vsel %vm225, %v124, 0
    %v335 = vsel %vm225, %v125, 0
    %v338 = vsel %vm225, %v126, 0
    %v341 = vsel %vm225, %v127, 0
    %v344 = vsel %vm225, %v128, 0
    %v347 = vsel %vm225, %v129, 0
    %v350 = vsel %vm225, %v130, 0
    %v353 = vsel %vm225, %v131, 0
    %v356 = vsel %vm225, %v132, 0
    %v359 = vsel %vm225, %v133, 0
    %v362 = vsel %vm225, %v134, 0
    %v365 = vsel %vm225, %v135, 0
    %v368 = vsel %vm225, %v136, 0
    %v371 = vsel %vm225, %v137, 0
    %v374 = vsel %vm225, %v138, 0
    %v377 = vsel %vm225, %v139, 0
    %v380 = vsel %vm225, %v140, 0
    %v383 = vsel %vm225, %v141, 0
    %v386 = vsel %vm225, %v142, 0
    %v389 = vsel %vm225, %v143, 0
    %v392 = vsel %vm225, %v144, 0
    %v395 = vsel %vm225, %v145, 0
    %v398 = vsel %vm225, %v146, 0
    %v401 = vsel %vm225, %v147, 0
    %v404 = vsel %vm225, %v148, 0
    %v407 = vsel %vm225, %v149, 0
    %v410 = vsel %vm225, %v150, 0
    %v413 = vsel %vm225, %v151, 0
    %v416 = vsel %vm225, %v152, 0
    %418 = vmatprep.subr.mxu0 0.0
    %419 = vmatpush1.msra.mxu0 0.0
    %420 = vmatprep.subr.mxu0 0.0
    %421 = vmatpush1.msra.mxu0 0.0
    %422 = vmatprep.subr.mxu0 0.0
    %423 = vmatpush1.msra.mxu0 0.0
    %424 = vmatprep.subr.mxu0 0.0
    %425 = vmatpush1.msra.mxu0 0.0
    %426 = vmatprep.subr.mxu0 0.0
    %427 = vmatpush1.msra.mxu0 0.0
    %428 = vmatprep.subr.mxu0 0.0
    %429 = vmatpush1.msra.mxu0 0.0
    %430 = vmatprep.subr.mxu0 0.0
    %431 = vmatpush1.msra.mxu0 0.0
    %432 = vmatprep.subr.mxu0 0.0
    %433 = vmatpush1.msra.mxu0 0.0
    %434 = vmatprep.subr.mxu0 0.0
    %435 = vmatpush1.msra.mxu0 %v224
    %436 = vmatprep.subr.mxu0 0.0
    %437 = vmatpush1.msra.mxu0 %v223
    %438 = vmatprep.subr.mxu0 0.0
    %439 = vmatpush1.msra.mxu0 %v222
    %440 = vmatprep.subr.mxu0 0.0
    %441 = vmatpush1.msra.mxu0 %v221
    %442 = vmatprep.subr.mxu0 0.0
    %443 = vmatpush1.msra.mxu0 %v220
    %444 = vmatprep.subr.mxu0 0.0
    %445 = vmatpush1.msra.mxu0 %v219
    %446 = vmatprep.subr.mxu0 0.0
    %447 = vmatpush1.msra.mxu0 %v218
    %448 = vmatprep.subr.mxu0 0.0
    %449 = vmatpush1.msra.mxu0 %v217
    %450 = vmatprep.subr.mxu0 0.0
    %451 = vmatpush2.msra.mxu0 0.0
    %452 = vmatprep.subr.mxu0 0.0
    %453 = vmatpush2.msra.mxu0 0.0
    %454 = vmatprep.subr.mxu0 0.0
    %455 = vmatpush2.msra.mxu0 0.0
    %456 = vmatprep.subr.mxu0 0.0
    %457 = vmatpush2.msra.mxu0 0.0
    %458 = vmatprep.subr.mxu0 0.0
    %459 = vmatpush2.msra.mxu0 0.0
    %460 = vmatprep.subr.mxu0 0.0
    %461 = vmatpush2.msra.mxu0 0.0
    %462 = vmatprep.subr.mxu0 0.0
    %463 = vmatpush2.msra.mxu0 0.0
    %464 = vmatprep.subr.mxu0 0.0
    %465 = vmatpush2.msra.mxu0 0.0
    %466 = vmatprep.subr.mxu0 0.0
    %467 = vmatpush2.msra.mxu0 0.0
    %468 = vmatprep.subr.mxu0 0.0
    %469 = vmatpush2.msra.mxu0 0.0
    %470 = vmatprep.subr.mxu0 0.0
    %471 = vmatpush2.msra.mxu0 0.0
    %472 = vmatprep.subr.mxu0 0.0
    %473 = vmatpush2.msra.mxu0 0.0
    %474 = vmatprep.subr.mxu0 0.0
    %475 = vmatpush2.msra.mxu0 0.0
    %476 = vmatprep.subr.mxu0 0.0
    %477 = vmatpush2.msra.mxu0 0.0
    %478 = vmatprep.subr.mxu0 0.0
    %479 = vmatpush2.msra.mxu0 0.0
    %480 = vmatprep.subr.mxu0 0.0
    %481 = vmatpush2.msra.mxu0 0.0
    %482 = vmatprep.mubr.f32.mxu0 0.0
    %483 = vmatmul.mubr.f32.gmra.mxu0 %v227
    %v484 = vpop.f32.mrf.mxu0
    %v485 = vadd.f32 0.0, %v484
    %v486 = vpop.f32.mrf.mxu0
    %487 = vmatprep.mubr.f32.mxu0 0.0
    %488 = vmatmul.mubr.f32.gmra.mxu0 %v230
    %v489 = vpop.f32.mrf.mxu0
    %v490 = vadd.f32 0.0, %v489
    %v491 = vpop.f32.mrf.mxu0
    %492 = vmatprep.mubr.f32.mxu0 0.0
    %493 = vmatmul.mubr.f32.gmra.mxu0 %v233
    %v494 = vpop.f32.mrf.mxu0
    %v495 = vadd.f32 0.0, %v494
    %v496 = vpop.f32.mrf.mxu0
    %497 = vmatprep.mubr.f32.mxu0 0.0
    %498 = vmatmul.mubr.f32.gmra.mxu0 %v236
    %v499 = vpop.f32.mrf.mxu0
    %v500 = vadd.f32 0.0, %v499
    %v501 = vpop.f32.mrf.mxu0
    %502 = vmatprep.mubr.f32.mxu0 0.0
    %503 = vmatmul.mubr.f32.gmra.mxu0 %v239
    %v504 = vpop.f32.mrf.mxu0
    %v505 = vadd.f32 0.0, %v504
    %v506 = vpop.f32.mrf.mxu0
    %507 = vmatprep.mubr.f32.mxu0 0.0
    %508 = vmatmul.mubr.f32.gmra.mxu0 %v242
    %v509 = vpop.f32.mrf.mxu0
    %v510 = vadd.f32 0.0, %v509
    %v511 = vpop.f32.mrf.mxu0
    %512 = vmatprep.mubr.f32.mxu0 0.0
    %513 = vmatmul.mubr.f32.gmra.mxu0 %v245
    %v514 = vpop.f32.mrf.mxu0
    %v515 = vadd.f32 0.0, %v514
    %v516 = vpop.f32.mrf.mxu0
    %517 = vmatprep.mubr.f32.mxu0 0.0
    %518 = vmatmul.mubr.f32.gmra.mxu0 %v248
    %v519 = vpop.f32.mrf.mxu0
    %v520 = vadd.f32 0.0, %v519
    %v521 = vpop.f32.mrf.mxu0
    %522 = vmatprep.mubr.f32.mxu0 0.0
    %523 = vmatmul.mubr.f32.gmra.mxu0 %v251
    %v524 = vpop.f32.mrf.mxu0
    %v525 = vadd.f32 0.0, %v524
    %v526 = vpop.f32.mrf.mxu0
    %527 = vmatprep.mubr.f32.mxu0 0.0
    %528 = vmatmul.mubr.f32.gmra.mxu0 %v254
    %v529 = vpop.f32.mrf.mxu0
    %v530 = vadd.f32 0.0, %v529
    %v531 = vpop.f32.mrf.mxu0
    %532 = vmatprep.mubr.f32.mxu0 0.0
    %533 = vmatmul.mubr.f32.gmra.mxu0 %v257
    %v534 = vpop.f32.mrf.mxu0
    %v535 = vadd.f32 0.0, %v534
    %v536 = vpop.f32.mrf.mxu0
    %537 = vmatprep.mubr.f32.mxu0 0.0
    %538 = vmatmul.mubr.f32.gmra.mxu0 %v260
    %v539 = vpop.f32.mrf.mxu0
    %v540 = vadd.f32 0.0, %v539
    %v541 = vpop.f32.mrf.mxu0
    %542 = vmatprep.mubr.f32.mxu0 0.0
    %543 = vmatmul.mubr.f32.gmra.mxu0 %v263
    %v544 = vpop.f32.mrf.mxu0
    %v545 = vadd.f32 0.0, %v544
    %v546 = vpop.f32.mrf.mxu0
    %547 = vmatprep.mubr.f32.mxu0 0.0
    %548 = vmatmul.mubr.f32.gmra.mxu0 %v266
    %v549 = vpop.f32.mrf.mxu0
    %v550 = vadd.f32 0.0, %v549
    %v551 = vpop.f32.mrf.mxu0
    %552 = vmatprep.mubr.f32.mxu0 0.0
    %553 = vmatmul.mubr.f32.gmra.mxu0 %v269
    %v554 = vpop.f32.mrf.mxu0
    %v555 = vadd.f32 0.0, %v554
    %v556 = vpop.f32.mrf.mxu0
    %557 = vmatprep.mubr.f32.mxu0 0.0
    %558 = vmatmul.mubr.f32.gmra.mxu0 %v272
    %v559 = vpop.f32.mrf.mxu0
    %v560 = vadd.f32 0.0, %v559
    %v561 = vpop.f32.mrf.mxu0
    %562 = vmatprep.mubr.f32.mxu0 0.0
    %563 = vmatmul.mubr.f32.gmra.mxu0 %v275
    %v564 = vpop.f32.mrf.mxu0
    %v565 = vadd.f32 0.0, %v564
    %v566 = vpop.f32.mrf.mxu0
    %567 = vmatprep.mubr.f32.mxu0 0.0
    %568 = vmatmul.mubr.f32.gmra.mxu0 %v278
    %v569 = vpop.f32.mrf.mxu0
    %v570 = vadd.f32 0.0, %v569
    %v571 = vpop.f32.mrf.mxu0
    %572 = vmatprep.mubr.f32.mxu0 0.0
    %573 = vmatmul.mubr.f32.gmra.mxu0 %v281
    %v574 = vpop.f32.mrf.mxu0
    %v575 = vadd.f32 0.0, %v574
    %v576 = vpop.f32.mrf.mxu0
    %577 = vmatprep.mubr.f32.mxu0 0.0
    %578 = vmatmul.mubr.f32.gmra.mxu0 %v284
    %v579 = vpop.f32.mrf.mxu0
    %v580 = vadd.f32 0.0, %v579
    %v581 = vpop.f32.mrf.mxu0
    %582 = vmatprep.mubr.f32.mxu0 0.0
    %583 = vmatmul.mubr.f32.gmra.mxu0 %v287
    %v584 = vpop.f32.mrf.mxu0
    %v585 = vadd.f32 0.0, %v584
    %v586 = vpop.f32.mrf.mxu0
    %587 = vmatprep.mubr.f32.mxu0 0.0
    %588 = vmatmul.mubr.f32.gmra.mxu0 %v290
    %v589 = vpop.f32.mrf.mxu0
    %v590 = vadd.f32 0.0, %v589
    %v591 = vpop.f32.mrf.mxu0
    %592 = vmatprep.mubr.f32.mxu0 0.0
    %593 = vmatmul.mubr.f32.gmra.mxu0 %v293
    %v594 = vpop.f32.mrf.mxu0
    %v595 = vadd.f32 0.0, %v594
    %v596 = vpop.f32.mrf.mxu0
    %597 = vmatprep.mubr.f32.mxu0 0.0
    %598 = vmatmul.mubr.f32.gmra.mxu0 %v296
    %v599 = vpop.f32.mrf.mxu0
    %v600 = vadd.f32 0.0, %v599
    %v601 = vpop.f32.mrf.mxu0
    %602 = vmatprep.mubr.f32.mxu0 0.0
    %603 = vmatmul.mubr.f32.gmra.mxu0 %v299
    %v604 = vpop.f32.mrf.mxu0
    %v605 = vadd.f32 0.0, %v604
    %v606 = vpop.f32.mrf.mxu0
    %607 = vmatprep.mubr.f32.mxu0 0.0
    %608 = vmatmul.mubr.f32.gmra.mxu0 %v302
    %v609 = vpop.f32.mrf.mxu0
    %v610 = vadd.f32 0.0, %v609
    %v611 = vpop.f32.mrf.mxu0
    %612 = vmatprep.mubr.f32.mxu0 0.0
    %613 = vmatmul.mubr.f32.gmra.mxu0 %v305
    %v614 = vpop.f32.mrf.mxu0
    %v615 = vadd.f32 0.0, %v614
    %v616 = vpop.f32.mrf.mxu0
    %617 = vmatprep.mubr.f32.mxu0 0.0
    %618 = vmatmul.mubr.f32.gmra.mxu0 %v308
    %v619 = vpop.f32.mrf.mxu0
    %v620 = vadd.f32 0.0, %v619
    %v621 = vpop.f32.mrf.mxu0
    %622 = vmatprep.mubr.f32.mxu0 0.0
    %623 = vmatmul.mubr.f32.gmra.mxu0 %v311
    %v624 = vpop.f32.mrf.mxu0
    %v625 = vadd.f32 0.0, %v624
    %v626 = vpop.f32.mrf.mxu0
    %627 = vmatprep.mubr.f32.mxu0 0.0
    %628 = vmatmul.mubr.f32.gmra.mxu0 %v314
    %v629 = vpop.f32.mrf.mxu0
    %v630 = vadd.f32 0.0, %v629
    %v631 = vpop.f32.mrf.mxu0
    %632 = vmatprep.mubr.f32.mxu0 0.0
    %633 = vmatmul.mubr.f32.gmra.mxu0 %v317
    %v634 = vpop.f32.mrf.mxu0
    %v635 = vadd.f32 0.0, %v634
    %v636 = vpop.f32.mrf.mxu0
    %637 = vmatprep.mubr.f32.mxu0 0.0
    %638 = vmatmul.mubr.f32.gmra.mxu0 %v320
    %v639 = vpop.f32.mrf.mxu0
    %v640 = vadd.f32 0.0, %v639
    %v641 = vpop.f32.mrf.mxu0
    %642 = vmatprep.mubr.f32.mxu0 0.0
    %643 = vmatmul.mubr.f32.gmra.mxu0 %v323
    %v644 = vpop.f32.mrf.mxu0
    %v645 = vadd.f32 0.0, %v644
    %v646 = vpop.f32.mrf.mxu0
    %647 = vmatprep.mubr.f32.mxu0 0.0
    %648 = vmatmul.mubr.f32.gmra.mxu0 %v326
    %v649 = vpop.f32.mrf.mxu0
    %v650 = vadd.f32 0.0, %v649
    %v651 = vpop.f32.mrf.mxu0
    %652 = vmatprep.mubr.f32.mxu0 0.0
    %653 = vmatmul.mubr.f32.gmra.mxu0 %v329
    %v654 = vpop.f32.mrf.mxu0
    %v655 = vadd.f32 0.0, %v654
    %v656 = vpop.f32.mrf.mxu0
    %657 = vmatprep.mubr.f32.mxu0 0.0
    %658 = vmatmul.mubr.f32.gmra.mxu0 %v332
    %v659 = vpop.f32.mrf.mxu0
    %v660 = vadd.f32 0.0, %v659
    %v661 = vpop.f32.mrf.mxu0
    %662 = vmatprep.mubr.f32.mxu0 0.0
    %663 = vmatmul.mubr.f32.gmra.mxu0 %v335
    %v664 = vpop.f32.mrf.mxu0
    %v665 = vadd.f32 0.0, %v664
    %v666 = vpop.f32.mrf.mxu0
    %667 = vmatprep.mubr.f32.mxu0 0.0
    %668 = vmatmul.mubr.f32.gmra.mxu0 %v338
    %v669 = vpop.f32.mrf.mxu0
    %v670 = vadd.f32 0.0, %v669
    %v671 = vpop.f32.mrf.mxu0
    %672 = vmatprep.mubr.f32.mxu0 0.0
    %673 = vmatmul.mubr.f32.gmra.mxu0 %v341
    %v674 = vpop.f32.mrf.mxu0
    %v675 = vadd.f32 0.0, %v674
    %v676 = vpop.f32.mrf.mxu0
    %677 = vmatprep.mubr.f32.mxu0 0.0
    %678 = vmatmul.mubr.f32.gmra.mxu0 %v344
    %v679 = vpop.f32.mrf.mxu0
    %v680 = vadd.f32 0.0, %v679
    %v681 = vpop.f32.mrf.mxu0
    %682 = vmatprep.mubr.f32.mxu0 0.0
    %683 = vmatmul.mubr.f32.gmra.mxu0 %v347
    %v684 = vpop.f32.mrf.mxu0
    %v685 = vadd.f32 0.0, %v684
    %v686 = vpop.f32.mrf.mxu0
    %687 = vmatprep.mubr.f32.mxu0 0.0
    %688 = vmatmul.mubr.f32.gmra.mxu0 %v350
    %v689 = vpop.f32.mrf.mxu0
    %v690 = vadd.f32 0.0, %v689
    %v691 = vpop.f32.mrf.mxu0
    %692 = vmatprep.mubr.f32.mxu0 0.0
    %693 = vmatmul.mubr.f32.gmra.mxu0 %v353
    %v694 = vpop.f32.mrf.mxu0
    %v695 = vadd.f32 0.0, %v694
    %v696 = vpop.f32.mrf.mxu0
    %697 = vmatprep.mubr.f32.mxu0 0.0
    %698 = vmatmul.mubr.f32.gmra.mxu0 %v356
    %v699 = vpop.f32.mrf.mxu0
    %v700 = vadd.f32 0.0, %v699
    %v701 = vpop.f32.mrf.mxu0
    %702 = vmatprep.mubr.f32.mxu0 0.0
    %703 = vmatmul.mubr.f32.gmra.mxu0 %v359
    %v704 = vpop.f32.mrf.mxu0
    %v705 = vadd.f32 0.0, %v704
    %v706 = vpop.f32.mrf.mxu0
    %707 = vmatprep.mubr.f32.mxu0 0.0
    %708 = vmatmul.mubr.f32.gmra.mxu0 %v362
    %v709 = vpop.f32.mrf.mxu0
    %v710 = vadd.f32 0.0, %v709
    %v711 = vpop.f32.mrf.mxu0
    %712 = vmatprep.mubr.f32.mxu0 0.0
    %713 = vmatmul.mubr.f32.gmra.mxu0 %v365
    %v714 = vpop.f32.mrf.mxu0
    %v715 = vadd.f32 0.0, %v714
    %v716 = vpop.f32.mrf.mxu0
    %717 = vmatprep.mubr.f32.mxu0 0.0
    %718 = vmatmul.mubr.f32.gmra.mxu0 %v368
    %v719 = vpop.f32.mrf.mxu0
    %v720 = vadd.f32 0.0, %v719
    %v721 = vpop.f32.mrf.mxu0
    %722 = vmatprep.mubr.f32.mxu0 0.0
    %723 = vmatmul.mubr.f32.gmra.mxu0 %v371
    %v724 = vpop.f32.mrf.mxu0
    %v725 = vadd.f32 0.0, %v724
    %v726 = vpop.f32.mrf.mxu0
    %727 = vmatprep.mubr.f32.mxu0 0.0
    %728 = vmatmul.mubr.f32.gmra.mxu0 %v374
    %v729 = vpop.f32.mrf.mxu0
    %v730 = vadd.f32 0.0, %v729
    %v731 = vpop.f32.mrf.mxu0
    %732 = vmatprep.mubr.f32.mxu0 0.0
    %733 = vmatmul.mubr.f32.gmra.mxu0 %v377
    %v734 = vpop.f32.mrf.mxu0
    %v735 = vadd.f32 0.0, %v734
    %v736 = vpop.f32.mrf.mxu0
    %737 = vmatprep.mubr.f32.mxu0 0.0
    %738 = vmatmul.mubr.f32.gmra.mxu0 %v380
    %v739 = vpop.f32.mrf.mxu0
    %v740 = vadd.f32 0.0, %v739
    %v741 = vpop.f32.mrf.mxu0
    %742 = vmatprep.mubr.f32.mxu0 0.0
    %743 = vmatmul.mubr.f32.gmra.mxu0 %v383
    %v744 = vpop.f32.mrf.mxu0
    %v745 = vadd.f32 0.0, %v744
    %v746 = vpop.f32.mrf.mxu0
    %747 = vmatprep.mubr.f32.mxu0 0.0
    %748 = vmatmul.mubr.f32.gmra.mxu0 %v386
    %v749 = vpop.f32.mrf.mxu0
    %v750 = vadd.f32 0.0, %v749
    %v751 = vpop.f32.mrf.mxu0
    %752 = vmatprep.mubr.f32.mxu0 0.0
    %753 = vmatmul.mubr.f32.gmra.mxu0 %v389
    %v754 = vpop.f32.mrf.mxu0
    %v755 = vadd.f32 0.0, %v754
    %v756 = vpop.f32.mrf.mxu0
    %757 = vmatprep.mubr.f32.mxu0 0.0
    %758 = vmatmul.mubr.f32.gmra.mxu0 %v392
    %v759 = vpop.f32.mrf.mxu0
    %v760 = vadd.f32 0.0, %v759
    %v761 = vpop.f32.mrf.mxu0
    %762 = vmatprep.mubr.f32.mxu0 0.0
    %763 = vmatmul.mubr.f32.gmra.mxu0 %v395
    %v764 = vpop.f32.mrf.mxu0
    %v765 = vadd.f32 0.0, %v764
    %v766 = vpop.f32.mrf.mxu0
    %767 = vmatprep.mubr.f32.mxu0 0.0
    %768 = vmatmul.mubr.f32.gmra.mxu0 %v398
    %v769 = vpop.f32.mrf.mxu0
    %v770 = vadd.f32 0.0, %v769
    %v771 = vpop.f32.mrf.mxu0
    %772 = vmatprep.mubr.f32.mxu0 0.0
    %773 = vmatmul.mubr.f32.gmra.mxu0 %v401
    %v774 = vpop.f32.mrf.mxu0
    %v775 = vadd.f32 0.0, %v774
    %v776 = vpop.f32.mrf.mxu0
    %777 = vmatprep.mubr.f32.mxu0 0.0
    %778 = vmatmul.mubr.f32.gmra.mxu0 %v404
    %v779 = vpop.f32.mrf.mxu0
    %v780 = vadd.f32 0.0, %v779
    %v781 = vpop.f32.mrf.mxu0
    %782 = vmatprep.mubr.f32.mxu0 0.0
    %783 = vmatmul.mubr.f32.gmra.mxu0 %v407
    %v784 = vpop.f32.mrf.mxu0
    %v785 = vadd.f32 0.0, %v784
    %v786 = vpop.f32.mrf.mxu0
    %787 = vmatprep.mubr.f32.mxu0 0.0
    %788 = vmatmul.mubr.f32.gmra.mxu0 %v410
    %v789 = vpop.f32.mrf.mxu0
    %v790 = vadd.f32 0.0, %v789
    %v791 = vpop.f32.mrf.mxu0
    %792 = vmatprep.mubr.f32.mxu0 0.0
    %793 = vmatmul.mubr.f32.gmra.mxu0 %v413
    %v794 = vpop.f32.mrf.mxu0
    %v795 = vadd.f32 0.0, %v794
    %v796 = vpop.f32.mrf.mxu0
    %797 = vmatprep.mubr.f32.mxu0 0.0
    %798 = vmatmul.mubr.f32.gmra.mxu0 %v416
    %v799 = vpop.f32.mrf.mxu0
    %v800 = vadd.f32 0.0, %v799
    %v801 = vpop.f32.mrf.mxu0
    %802 = vdwg.mxu0
    %v803 = vadd.f32 %v153, %v485
    %v804 = vadd.f32 %v154, %v490
    %v805 = vadd.f32 %v155, %v495
    %v806 = vadd.f32 %v156, %v500
    %v807 = vadd.f32 %v157, %v505
    %v808 = vadd.f32 %v158, %v510
    %v809 = vadd.f32 %v159, %v515
    %v810 = vadd.f32 %v160, %v520
    %v811 = vadd.f32 %v161, %v525
    %v812 = vadd.f32 %v162, %v530
    %v813 = vadd.f32 %v163, %v535
    %v814 = vadd.f32 %v164, %v540
    %v815 = vadd.f32 %v165, %v545
    %v816 = vadd.f32 %v166, %v550
    %v817 = vadd.f32 %v167, %v555
    %v818 = vadd.f32 %v168, %v560
    %v819 = vadd.f32 %v169, %v565
    %v820 = vadd.f32 %v170, %v570
    %v821 = vadd.f32 %v171, %v575
    %v822 = vadd.f32 %v172, %v580
    %v823 = vadd.f32 %v173, %v585
    %v824 = vadd.f32 %v174, %v590
    %v825 = vadd.f32 %v175, %v595
    %v826 = vadd.f32 %v176, %v600
    %v827 = vadd.f32 %v177, %v605
    %v828 = vadd.f32 %v178, %v610
    %v829 = vadd.f32 %v179, %v615
    %v830 = vadd.f32 %v180, %v620
    %v831 = vadd.f32 %v181, %v625
    %v832 = vadd.f32 %v182, %v630
    %v833 = vadd.f32 %v183, %v635
    %v834 = vadd.f32 %v184, %v640
    %v835 = vadd.f32 %v185, %v645
    %v836 = vadd.f32 %v186, %v650
    %v837 = vadd.f32 %v187, %v655
    %v838 = vadd.f32 %v188, %v660
    %v839 = vadd.f32 %v189, %v665
    %v840 = vadd.f32 %v190, %v670
    %v841 = vadd.f32 %v191, %v675
    %v842 = vadd.f32 %v192, %v680
    %v843 = vadd.f32 %v193, %v685
    %v844 = vadd.f32 %v194, %v690
    %v845 = vadd.f32 %v195, %v695
    %v846 = vadd.f32 %v196, %v700
    %v847 = vadd.f32 %v197, %v705
    %v848 = vadd.f32 %v198, %v710
    %v849 = vadd.f32 %v199, %v715
    %v850 = vadd.f32 %v200, %v720
    %v851 = vadd.f32 %v201, %v725
    %v852 = vadd.f32 %v202, %v730
    %v853 = vadd.f32 %v203, %v735
    %v854 = vadd.f32 %v204, %v740
    %v855 = vadd.f32 %v205, %v745
    %v856 = vadd.f32 %v206, %v750
    %v857 = vadd.f32 %v207, %v755
    %v858 = vadd.f32 %v208, %v760
    %v859 = vadd.f32 %v209, %v765
    %v860 = vadd.f32 %v210, %v770
    %v861 = vadd.f32 %v211, %v775
    %v862 = vadd.f32 %v212, %v780
    %v863 = vadd.f32 %v213, %v785
    %v864 = vadd.f32 %v214, %v790
    %v865 = vadd.f32 %v215, %v795
    %v866 = vadd.f32 %v216, %v800
    %vm867 = vcmask 130048
    %868 = vst.msk [vmem:[#allocation2] sm:$0xff] %vm867, %v803
    %869 = vst.msk [vmem:[#allocation2 + $0x8] sm:$0xff] %vm867, %v804
    %870 = vst.msk [vmem:[#allocation2 + $0x10] sm:$0xff] %vm867, %v805
    %871 = vst.msk [vmem:[#allocation2 + $0x18] sm:$0xff] %vm867, %v806
    %872 = vst.msk [vmem:[#allocation2 + $0x20] sm:$0xff] %vm867, %v807
    %873 = vst.msk [vmem:[#allocation2 + $0x28] sm:$0xff] %vm867, %v808
    %874 = vst.msk [vmem:[#allocation2 + $0x30] sm:$0xff] %vm867, %v809
    %875 = vst.msk [vmem:[#allocation2 + $0x38] sm:$0xff] %vm867, %v810
    %876 = vst.msk [vmem:[#allocation2 + $0x40] sm:$0xff] %vm867, %v811
    %877 = vst.msk [vmem:[#allocation2 + $0x48] sm:$0xff] %vm867, %v812
    %878 = vst.msk [vmem:[#allocation2 + $0x50] sm:$0xff] %vm867, %v813
    %879 = vst.msk [vmem:[#allocation2 + $0x58] sm:$0xff] %vm867, %v814
    %880 = vst.msk [vmem:[#allocation2 + $0x60] sm:$0xff] %vm867, %v815
    %881 = vst.msk [vmem:[#allocation2 + $0x68] sm:$0xff] %vm867, %v816
    %882 = vst.msk [vmem:[#allocation2 + $0x70] sm:$0xff] %vm867, %v817
    %883 = vst.msk [vmem:[#allocation2 + $0x78] sm:$0xff] %vm867, %v818
    %884 = vst.msk [vmem:[#allocation2 + $0x80] sm:$0xff] %vm867, %v819
    %885 = vst.msk [vmem:[#allocation2 + $0x88] sm:$0xff] %vm867, %v820
    %886 = vst.msk [vmem:[#allocation2 + $0x90] sm:$0xff] %vm867, %v821
    %887 = vst.msk [vmem:[#allocation2 + $0x98] sm:$0xff] %vm867, %v822
    %888 = vst.msk [vmem:[#allocation2 + $0xa0] sm:$0xff] %vm867, %v823
    %889 = vst.msk [vmem:[#allocation2 + $0xa8] sm:$0xff] %vm867, %v824
    %890 = vst.msk [vmem:[#allocation2 + $0xb0] sm:$0xff] %vm867, %v825
    %891 = vst.msk [vmem:[#allocation2 + $0xb8] sm:$0xff] %vm867, %v826
    %892 = vst.msk [vmem:[#allocation2 + $0xc0] sm:$0xff] %vm867, %v827
    %893 = vst.msk [vmem:[#allocation2 + $0xc8] sm:$0xff] %vm867, %v828
    %894 = vst.msk [vmem:[#allocation2 + $0xd0] sm:$0xff] %vm867, %v829
    %895 = vst.msk [vmem:[#allocation2 + $0xd8] sm:$0xff] %vm867, %v830
    %896 = vst.msk [vmem:[#allocation2 + $0xe0] sm:$0xff] %vm867, %v831
    %897 = vst.msk [vmem:[#allocation2 + $0xe8] sm:$0xff] %vm867, %v832
    %898 = vst.msk [vmem:[#allocation2 + $0xf0] sm:$0xff] %vm867, %v833
    %899 = vst.msk [vmem:[#allocation2 + $0xf8] sm:$0xff] %vm867, %v834
    %900 = vst.msk [vmem:[#allocation2 + $0x100] sm:$0xff] %vm867, %v835
    %901 = vst.msk [vmem:[#allocation2 + $0x108] sm:$0xff] %vm867, %v836
    %902 = vst.msk [vmem:[#allocation2 + $0x110] sm:$0xff] %vm867, %v837
    %903 = vst.msk [vmem:[#allocation2 + $0x118] sm:$0xff] %vm867, %v838
    %904 = vst.msk [vmem:[#allocation2 + $0x120] sm:$0xff] %vm867, %v839
    %905 = vst.msk [vmem:[#allocation2 + $0x128] sm:$0xff] %vm867, %v840
    %906 = vst.msk [vmem:[#allocation2 + $0x130] sm:$0xff] %vm867, %v841
    %907 = vst.msk [vmem:[#allocation2 + $0x138] sm:$0xff] %vm867, %v842
    %908 = vst.msk [vmem:[#allocation2 + $0x140] sm:$0xff] %vm867, %v843
    %909 = vst.msk [vmem:[#allocation2 + $0x148] sm:$0xff] %vm867, %v844
    %910 = vst.msk [vmem:[#allocation2 + $0x150] sm:$0xff] %vm867, %v845
    %911 = vst.msk [vmem:[#allocation2 + $0x158] sm:$0xff] %vm867, %v846
    %912 = vst.msk [vmem:[#allocation2 + $0x160] sm:$0xff] %vm867, %v847
    %913 = vst.msk [vmem:[#allocation2 + $0x168] sm:$0xff] %vm867, %v848
    %914 = vst.msk [vmem:[#allocation2 + $0x170] sm:$0xff] %vm867, %v849
    %915 = vst.msk [vmem:[#allocation2 + $0x178] sm:$0xff] %vm867, %v850
    %916 = vst.msk [vmem:[#allocation2 + $0x180] sm:$0xff] %vm867, %v851
    %917 = vst.msk [vmem:[#allocation2 + $0x188] sm:$0xff] %vm867, %v852
    %918 = vst.msk [vmem:[#allocation2 + $0x190] sm:$0xff] %vm867, %v853
    %919 = vst.msk [vmem:[#allocation2 + $0x198] sm:$0xff] %vm867, %v854
    %920 = vst.msk [vmem:[#allocation2 + $0x1a0] sm:$0xff] %vm867, %v855
    %921 = vst.msk [vmem:[#allocation2 + $0x1a8] sm:$0xff] %vm867, %v856
    %922 = vst.msk [vmem:[#allocation2 + $0x1b0] sm:$0xff] %vm867, %v857
    %923 = vst.msk [vmem:[#allocation2 + $0x1b8] sm:$0xff] %vm867, %v858
    %924 = vst.msk [vmem:[#allocation2 + $0x1c0] sm:$0xff] %vm867, %v859
    %925 = vst.msk [vmem:[#allocation2 + $0x1c8] sm:$0xff] %vm867, %v860
    %926 = vst.msk [vmem:[#allocation2 + $0x1d0] sm:$0xff] %vm867, %v861
    %927 = vst.msk [vmem:[#allocation2 + $0x1d8] sm:$0xff] %vm867, %v862
    %928 = vst.msk [vmem:[#allocation2 + $0x1e0] sm:$0xff] %vm867, %v863
    %929 = vst.msk [vmem:[#allocation2 + $0x1e8] sm:$0xff] %vm867, %v864
    %930 = vst.msk [vmem:[#allocation2 + $0x1f0] sm:$0xff] %vm867, %v865
    %931 = vst.msk [vmem:[#allocation2 + $0x1f8] sm:$0xff] %vm867, %v866
    %v932 = vmul.f32 %v89, %v89
    %v933 = vmul.f32 %v90, %v90
    %v934 = vmul.f32 %v91, %v91
    %v935 = vmul.f32 %v92, %v92
    %v936 = vmul.f32 %v93, %v93
    %v937 = vmul.f32 %v94, %v94
    %v938 = vmul.f32 %v95, %v95
    %v939 = vmul.f32 %v96, %v96
    %v940 = vmul.f32 %v97, %v97
    %v941 = vmul.f32 %v98, %v98
    %v942 = vmul.f32 %v99, %v99
    %v943 = vmul.f32 %v100, %v100
    %v944 = vmul.f32 %v101, %v101
    %v945 = vmul.f32 %v102, %v102
    %v946 = vmul.f32 %v103, %v103
    %v947 = vmul.f32 %v104, %v104
    %v948 = vmul.f32 %v105, %v105
    %v949 = vmul.f32 %v106, %v106
    %v950 = vmul.f32 %v107, %v107
    %v951 = vmul.f32 %v108, %v108
    %v952 = vmul.f32 %v109, %v109
    %v953 = vmul.f32 %v110, %v110
    %v954 = vmul.f32 %v111, %v111
    %v955 = vmul.f32 %v112, %v112
    %v956 = vmul.f32 %v113, %v113
    %v957 = vmul.f32 %v114, %v114
    %v958 = vmul.f32 %v115, %v115
    %v959 = vmul.f32 %v116, %v116
    %v960 = vmul.f32 %v117, %v117
    %v961 = vmul.f32 %v118, %v118
    %v962 = vmul.f32 %v119, %v119
    %v963 = vmul.f32 %v120, %v120
    %v964 = vmul.f32 %v121, %v121
    %v965 = vmul.f32 %v122, %v122
    %v966 = vmul.f32 %v123, %v123
    %v967 = vmul.f32 %v124, %v124
    %v968 = vmul.f32 %v125, %v125
    %v969 = vmul.f32 %v126, %v126
    %v970 = vmul.f32 %v127, %v127
    %v971 = vmul.f32 %v128, %v128
    %v972 = vmul.f32 %v129, %v129
    %v973 = vmul.f32 %v130, %v130
    %v974 = vmul.f32 %v131, %v131
    %v975 = vmul.f32 %v132, %v132
    %v976 = vmul.f32 %v133, %v133
    %v977 = vmul.f32 %v134, %v134
    %v978 = vmul.f32 %v135, %v135
    %v979 = vmul.f32 %v136, %v136
    %v980 = vmul.f32 %v137, %v137
    %v981 = vmul.f32 %v138, %v138
    %v982 = vmul.f32 %v139, %v139
    %v983 = vmul.f32 %v140, %v140
    %v984 = vmul.f32 %v141, %v141
    %v985 = vmul.f32 %v142, %v142
    %v986 = vmul.f32 %v143, %v143
    %v987 = vmul.f32 %v144, %v144
    %v988 = vmul.f32 %v145, %v145
    %v989 = vmul.f32 %v146, %v146
    %v990 = vmul.f32 %v147, %v147
    %v991 = vmul.f32 %v148, %v148
    %v992 = vmul.f32 %v149, %v149
    %v993 = vmul.f32 %v150, %v150
    %v994 = vmul.f32 %v151, %v151
    %v995 = vmul.f32 %v152, %v152
    %v996 = vld [vmem:[#allocation3] sm:$0xf]
    %v997 = vld [vmem:[%s2] sm:$0x1]
    %v999 = vsel %vm225, %v997, 0
    %v1002 = vsel %vm225, %v932, 0
    %v1005 = vsel %vm225, %v933, 0
    %v1008 = vsel %vm225, %v934, 0
    %v1011 = vsel %vm225, %v935, 0
    %v1014 = vsel %vm225, %v936, 0
    %v1017 = vsel %vm225, %v937, 0
    %v1020 = vsel %vm225, %v938, 0
    %v1023 = vsel %vm225, %v939, 0
    %v1026 = vsel %vm225, %v940, 0
    %v1029 = vsel %vm225, %v941, 0
    %v1032 = vsel %vm225, %v942, 0
    %v1035 = vsel %vm225, %v943, 0
    %v1038 = vsel %vm225, %v944, 0
    %v1041 = vsel %vm225, %v945, 0
    %v1044 = vsel %vm225, %v946, 0
    %v1047 = vsel %vm225, %v947, 0
    %v1050 = vsel %vm225, %v948, 0
    %v1053 = vsel %vm225, %v949, 0
    %v1056 = vsel %vm225, %v950, 0
    %v1059 = vsel %vm225, %v951, 0
    %v1062 = vsel %vm225, %v952, 0
    %v1065 = vsel %vm225, %v953, 0
    %v1068 = vsel %vm225, %v954, 0
    %v1071 = vsel %vm225, %v955, 0
    %v1074 = vsel %vm225, %v956, 0
    %v1077 = vsel %vm225, %v957, 0
    %v1080 = vsel %vm225, %v958, 0
    %v1083 = vsel %vm225, %v959, 0
    %v1086 = vsel %vm225, %v960, 0
    %v1089 = vsel %vm225, %v961, 0
    %v1092 = vsel %vm225, %v962, 0
    %v1095 = vsel %vm225, %v963, 0
    %v1098 = vsel %vm225, %v964, 0
    %v1101 = vsel %vm225, %v965, 0
    %v1104 = vsel %vm225, %v966, 0
    %v1107 = vsel %vm225, %v967, 0
    %v1110 = vsel %vm225, %v968, 0
    %v1113 = vsel %vm225, %v969, 0
    %v1116 = vsel %vm225, %v970, 0
    %v1119 = vsel %vm225, %v971, 0
    %v1122 = vsel %vm225, %v972, 0
    %v1125 = vsel %vm225, %v973, 0
    %v1128 = vsel %vm225, %v974, 0
    %v1131 = vsel %vm225, %v975, 0
    %v1134 = vsel %vm225, %v976, 0
    %v1137 = vsel %vm225, %v977, 0
    %v1140 = vsel %vm225, %v978, 0
    %v1143 = vsel %vm225, %v979, 0
    %v1146 = vsel %vm225, %v980, 0
    %v1149 = vsel %vm225, %v981, 0
    %v1152 = vsel %vm225, %v982, 0
    %v1155 = vsel %vm225, %v983, 0
    %v1158 = vsel %vm225, %v984, 0
    %v1161 = vsel %vm225, %v985, 0
    %v1164 = vsel %vm225, %v986, 0
    %v1167 = vsel %vm225, %v987, 0
    %v1170 = vsel %vm225, %v988, 0
    %v1173 = vsel %vm225, %v989, 0
    %v1176 = vsel %vm225, %v990, 0
    %v1179 = vsel %vm225, %v991, 0
    %v1182 = vsel %vm225, %v992, 0
    %v1185 = vsel %vm225, %v993, 0
    %v1188 = vsel %vm225, %v994, 0
    %v1191 = vsel %vm225, %v995, 0
    %1193 = vmatprep.subr.mxu0 0.0
    %1194 = vmatpush1.xpose.msra.mxu0 %v1047
    %1195 = vmatprep.subr.mxu0 0.0
    %1196 = vmatpush1.xpose.msra.mxu0 %v1044
    %1197 = vmatprep.subr.mxu0 0.0
    %1198 = vmatpush1.xpose.msra.mxu0 %v1041
    %1199 = vmatprep.subr.mxu0 0.0
    %1200 = vmatpush1.xpose.msra.mxu0 %v1038
    %1201 = vmatprep.subr.mxu0 0.0
    %1202 = vmatpush1.xpose.msra.mxu0 %v1035
    %1203 = vmatprep.subr.mxu0 0.0
    %1204 = vmatpush1.xpose.msra.mxu0 %v1032
    %1205 = vmatprep.subr.mxu0 0.0
    %1206 = vmatpush1.xpose.msra.mxu0 %v1029
    %1207 = vmatprep.subr.mxu0 0.0
    %1208 = vmatpush1.xpose.msra.mxu0 %v1026
    %1209 = vmatprep.subr.mxu0 0.0
    %1210 = vmatpush1.xpose.msra.mxu0 %v1023
    %1211 = vmatprep.subr.mxu0 0.0
    %1212 = vmatpush1.xpose.msra.mxu0 %v1020
    %1213 = vmatprep.subr.mxu0 0.0
    %1214 = vmatpush1.xpose.msra.mxu0 %v1017
    %1215 = vmatprep.subr.mxu0 0.0
    %1216 = vmatpush1.xpose.msra.mxu0 %v1014
    %1217 = vmatprep.subr.mxu0 0.0
    %1218 = vmatpush1.xpose.msra.mxu0 %v1011
    %1219 = vmatprep.subr.mxu0 0.0
    %1220 = vmatpush1.xpose.msra.mxu0 %v1008
    %1221 = vmatprep.subr.mxu0 0.0
    %1222 = vmatpush1.xpose.msra.mxu0 %v1005
    %1223 = vmatprep.subr.mxu0 0.0
    %1224 = vmatpush1.xpose.msra.mxu0 %v1002
    %1225 = vmatprep.subr.mxu0 0.0
    %1226 = vmatpush2.xpose.msra.mxu0 %v1095
    %1227 = vmatprep.subr.mxu0 0.0
    %1228 = vmatpush2.xpose.msra.mxu0 %v1092
    %1229 = vmatprep.subr.mxu0 0.0
    %1230 = vmatpush2.xpose.msra.mxu0 %v1089
    %1231 = vmatprep.subr.mxu0 0.0
    %1232 = vmatpush2.xpose.msra.mxu0 %v1086
    %1233 = vmatprep.subr.mxu0 0.0
    %1234 = vmatpush2.xpose.msra.mxu0 %v1083
    %1235 = vmatprep.subr.mxu0 0.0
    %1236 = vmatpush2.xpose.msra.mxu0 %v1080
    %1237 = vmatprep.subr.mxu0 0.0
    %1238 = vmatpush2.xpose.msra.mxu0 %v1077
    %1239 = vmatprep.subr.mxu0 0.0
    %1240 = vmatpush2.xpose.msra.mxu0 %v1074
    %1241 = vmatprep.subr.mxu0 0.0
    %1242 = vmatpush2.xpose.msra.mxu0 %v1071
    %1243 = vmatprep.subr.mxu0 0.0
    %1244 = vmatpush2.xpose.msra.mxu0 %v1068
    %1245 = vmatprep.subr.mxu0 0.0
    %1246 = vmatpush2.xpose.msra.mxu0 %v1065
    %1247 = vmatprep.subr.mxu0 0.0
    %1248 = vmatpush2.xpose.msra.mxu0 %v1062
    %1249 = vmatprep.subr.mxu0 0.0
    %1250 = vmatpush2.xpose.msra.mxu0 %v1059
    %1251 = vmatprep.subr.mxu0 0.0
    %1252 = vmatpush2.xpose.msra.mxu0 %v1056
    %1253 = vmatprep.subr.mxu0 0.0
    %1254 = vmatpush2.xpose.msra.mxu0 %v1053
    %1255 = vmatprep.subr.mxu0 0.0
    %1256 = vmatpush2.xpose.msra.mxu0 %v1050
    %1257 = vmatprep.mubr.f32.mxu0 0.0
    %1258 = vmatmul.mubr.f32.gmra.mxu0 %v999
    %v1259 = vpop.f32.mrf.mxu0
    %v1260 = vadd.f32 0.0, %v1259
    %v1261 = vpop.f32.mrf.mxu0
    %v1262 = vadd.f32 0.0, %v1261
    %1263 = vdwg.mxu0
    %1264 = vmatprep.subr.mxu0 0.0
    %1265 = vmatpush1.xpose.msra.mxu0 %v1143
    %1266 = vmatprep.subr.mxu0 0.0
    %1267 = vmatpush1.xpose.msra.mxu0 %v1140
    %1268 = vmatprep.subr.mxu0 0.0
    %1269 = vmatpush1.xpose.msra.mxu0 %v1137
    %1270 = vmatprep.subr.mxu0 0.0
    %1271 = vmatpush1.xpose.msra.mxu0 %v1134
    %1272 = vmatprep.subr.mxu0 0.0
    %1273 = vmatpush1.xpose.msra.mxu0 %v1131
    %1274 = vmatprep.subr.mxu0 0.0
    %1275 = vmatpush1.xpose.msra.mxu0 %v1128
    %1276 = vmatprep.subr.mxu0 0.0
    %1277 = vmatpush1.xpose.msra.mxu0 %v1125
    %1278 = vmatprep.subr.mxu0 0.0
    %1279 = vmatpush1.xpose.msra.mxu0 %v1122
    %1280 = vmatprep.subr.mxu0 0.0
    %1281 = vmatpush1.xpose.msra.mxu0 %v1119
    %1282 = vmatprep.subr.mxu0 0.0
    %1283 = vmatpush1.xpose.msra.mxu0 %v1116
    %1284 = vmatprep.subr.mxu0 0.0
    %1285 = vmatpush1.xpose.msra.mxu0 %v1113
    %1286 = vmatprep.subr.mxu0 0.0
    %1287 = vmatpush1.xpose.msra.mxu0 %v1110
    %1288 = vmatprep.subr.mxu0 0.0
    %1289 = vmatpush1.xpose.msra.mxu0 %v1107
    %1290 = vmatprep.subr.mxu0 0.0
    %1291 = vmatpush1.xpose.msra.mxu0 %v1104
    %1292 = vmatprep.subr.mxu0 0.0
    %1293 = vmatpush1.xpose.msra.mxu0 %v1101
    %1294 = vmatprep.subr.mxu0 0.0
    %1295 = vmatpush1.xpose.msra.mxu0 %v1098
    %1296 = vmatprep.subr.mxu0 0.0
    %1297 = vmatpush2.xpose.msra.mxu0 %v1191
    %1298 = vmatprep.subr.mxu0 0.0
    %1299 = vmatpush2.xpose.msra.mxu0 %v1188
    %1300 = vmatprep.subr.mxu0 0.0
    %1301 = vmatpush2.xpose.msra.mxu0 %v1185
    %1302 = vmatprep.subr.mxu0 0.0
    %1303 = vmatpush2.xpose.msra.mxu0 %v1182
    %1304 = vmatprep.subr.mxu0 0.0
    %1305 = vmatpush2.xpose.msra.mxu0 %v1179
    %1306 = vmatprep.subr.mxu0 0.0
    %1307 = vmatpush2.xpose.msra.mxu0 %v1176
    %1308 = vmatprep.subr.mxu0 0.0
    %1309 = vmatpush2.xpose.msra.mxu0 %v1173
    %1310 = vmatprep.subr.mxu0 0.0
    %1311 = vmatpush2.xpose.msra.mxu0 %v1170
    %1312 = vmatprep.subr.mxu0 0.0
    %1313 = vmatpush2.xpose.msra.mxu0 %v1167
    %1314 = vmatprep.subr.mxu0 0.0
    %1315 = vmatpush2.xpose.msra.mxu0 %v1164
    %1316 = vmatprep.subr.mxu0 0.0
    %1317 = vmatpush2.xpose.msra.mxu0 %v1161
    %1318 = vmatprep.subr.mxu0 0.0
    %1319 = vmatpush2.xpose.msra.mxu0 %v1158
    %1320 = vmatprep.subr.mxu0 0.0
    %1321 = vmatpush2.xpose.msra.mxu0 %v1155
    %1322 = vmatprep.subr.mxu0 0.0
    %1323 = vmatpush2.xpose.msra.mxu0 %v1152
    %1324 = vmatprep.subr.mxu0 0.0
    %1325 = vmatpush2.xpose.msra.mxu0 %v1149
    %1326 = vmatprep.subr.mxu0 0.0
    %1327 = vmatpush2.xpose.msra.mxu0 %v1146
    %1328 = vmatprep.mubr.f32.mxu0 0.0
    %1329 = vmatmul.mubr.f32.gmra.mxu0 %v999
    %v1330 = vpop.f32.mrf.mxu0
    %v1331 = vadd.f32 0.0, %v1330
    %v1332 = vpop.f32.mrf.mxu0
    %v1333 = vadd.f32 0.0, %v1332
    %1334 = vdwg.mxu0
    %v1339 = vcombine.low %v1260, %v1262
    %v1340 = vcombine.low %v1331, %v1333
    %v1342 = vunpack.c.l.s4 1966171168
    %v1343 = vunpack.c.0.s8 %v1342
    %v1344 = vlaneseq
    %v1345 = vshrl.u32 %v1344, 7
    %v1346 = vsub.s32 %v1343, %v1345
    %v1347 = vrot.slane %v1339, %v1346
    %v1349 = vunpack.c.l.s4 1966171168
    %v1350 = vunpack.c.0.s8 %v1349
    %v1351 = vlaneseq
    %v1352 = vshrl.u32 %v1351, 7
    %v1353 = vsub.s32 %v1350, %v1352
    %v1354 = vrot.slane %v1340, %v1353
    %v1355 = vcombine.low %v1347, %v1354
    %v1357 = vunpack.c.l.s4 1966171168
    %v1358 = vunpack.c.0.s8 %v1357
    %v1359 = vlaneseq
    %v1360 = vshrl.u32 %v1359, 7
    %v1361 = vsub.s32 %v1358, %v1360
    %v1362 = vrot.slane %v1355, %v1361
    %v1364 = vadd.f32 %v996, %v1362
    %v1365 = vlaneseq
    %vm1366 = vcmp.ge.s32.totalorder %v1365, 0
    %vm1367 = vcmp.lt.s32.totalorder %v1365, 512
    %vm1368 = vmand %vm1366, %vm1367
    %1369 = vst.msk [vmem:[#allocation3] sm:$0xf] %vm1368, %v1364
    // Predicated region
    $region18: #{tpu_custom_call.1} parent=1 // pred_check
      %p1370 = pneg %p15
    $region19: #{tpu_custom_call.1} parent=1 // pred_check_branch
      %1372 = sbr.rel (%p1370) target = $region21
    $region20: #{tpu_custom_call.1} parent=1 // pred_region
      %v1373 = vld [vmem:[#allocation2] sm:$0xff]
      %v1374 = vld [vmem:[#allocation2 + $0x8] sm:$0xff]
      %v1375 = vld [vmem:[#allocation2 + $0x10] sm:$0xff]
      %v1376 = vld [vmem:[#allocation2 + $0x18] sm:$0xff]
      %v1377 = vld [vmem:[#allocation2 + $0x20] sm:$0xff]
      %v1378 = vld [vmem:[#allocation2 + $0x28] sm:$0xff]
      %v1379 = vld [vmem:[#allocation2 + $0x30] sm:$0xff]
      %v1380 = vld [vmem:[#allocation2 + $0x38] sm:$0xff]
      %v1381 = vld [vmem:[#allocation2 + $0x40] sm:$0xff]
      %v1382 = vld [vmem:[#allocation2 + $0x48] sm:$0xff]
      %v1383 = vld [vmem:[#allocation2 + $0x50] sm:$0xff]
      %v1384 = vld [vmem:[#allocation2 + $0x58] sm:$0xff]
      %v1385 = vld [vmem:[#allocation2 + $0x60] sm:$0xff]
      %v1386 = vld [vmem:[#allocation2 + $0x68] sm:$0xff]
      %v1387 = vld [vmem:[#allocation2 + $0x70] sm:$0xff]
      %v1388 = vld [vmem:[#allocation2 + $0x78] sm:$0xff]
      %v1389 = vld [vmem:[#allocation2 + $0x80] sm:$0xff]
      %v1390 = vld [vmem:[#allocation2 + $0x88] sm:$0xff]
      %v1391 = vld [vmem:[#allocation2 + $0x90] sm:$0xff]
      %v1392 = vld [vmem:[#allocation2 + $0x98] sm:$0xff]
      %v1393 = vld [vmem:[#allocation2 + $0xa0] sm:$0xff]
      %v1394 = vld [vmem:[#allocation2 + $0xa8] sm:$0xff]
      %v1395 = vld [vmem:[#allocation2 + $0xb0] sm:$0xff]
      %v1396 = vld [vmem:[#allocation2 + $0xb8] sm:$0xff]
      %v1397 = vld [vmem:[#allocation2 + $0xc0] sm:$0xff]
      %v1398 = vld [vmem:[#allocation2 + $0xc8] sm:$0xff]
      %v1399 = vld [vmem:[#allocation2 + $0xd0] sm:$0xff]
      %v1400 = vld [vmem:[#allocation2 + $0xd8] sm:$0xff]
      %v1401 = vld [vmem:[#allocation2 + $0xe0] sm:$0xff]
      %v1402 = vld [vmem:[#allocation2 + $0xe8] sm:$0xff]
      %v1403 = vld [vmem:[#allocation2 + $0xf0] sm:$0xff]
      %v1404 = vld [vmem:[#allocation2 + $0xf8] sm:$0xff]
      %v1405 = vld [vmem:[#allocation2 + $0x100] sm:$0xff]
      %v1406 = vld [vmem:[#allocation2 + $0x108] sm:$0xff]
      %v1407 = vld [vmem:[#allocation2 + $0x110] sm:$0xff]
      %v1408 = vld [vmem:[#allocation2 + $0x118] sm:$0xff]
      %v1409 = vld [vmem:[#allocation2 + $0x120] sm:$0xff]
      %v1410 = vld [vmem:[#allocation2 + $0x128] sm:$0xff]
      %v1411 = vld [vmem:[#allocation2 + $0x130] sm:$0xff]
      %v1412 = vld [vmem:[#allocation2 + $0x138] sm:$0xff]
      %v1413 = vld [vmem:[#allocation2 + $0x140] sm:$0xff]
      %v1414 = vld [vmem:[#allocation2 + $0x148] sm:$0xff]
      %v1415 = vld [vmem:[#allocation2 + $0x150] sm:$0xff]
      %v1416 = vld [vmem:[#allocation2 + $0x158] sm:$0xff]
      %v1417 = vld [vmem:[#allocation2 + $0x160] sm:$0xff]
      %v1418 = vld [vmem:[#allocation2 + $0x168] sm:$0xff]
      %v1419 = vld [vmem:[#allocation2 + $0x170] sm:$0xff]
      %v1420 = vld [vmem:[#allocation2 + $0x178] sm:$0xff]
      %v1421 = vld [vmem:[#allocation2 + $0x180] sm:$0xff]
      %v1422 = vld [vmem:[#allocation2 + $0x188] sm:$0xff]
      %v1423 = vld [vmem:[#allocation2 + $0x190] sm:$0xff]
      %v1424 = vld [vmem:[#allocation2 + $0x198] sm:$0xff]
      %v1425 = vld [vmem:[#allocation2 + $0x1a0] sm:$0xff]
      %v1426 = vld [vmem:[#allocation2 + $0x1a8] sm:$0xff]
      %v1427 = vld [vmem:[#allocation2 + $0x1b0] sm:$0xff]
      %v1428 = vld [vmem:[#allocation2 + $0x1b8] sm:$0xff]
      %v1429 = vld [vmem:[#allocation2 + $0x1c0] sm:$0xff]
      %v1430 = vld [vmem:[#allocation2 + $0x1c8] sm:$0xff]
      %v1431 = vld [vmem:[#allocation2 + $0x1d0] sm:$0xff]
      %v1432 = vld [vmem:[#allocation2 + $0x1d8] sm:$0xff]
      %v1433 = vld [vmem:[#allocation2 + $0x1e0] sm:$0xff]
      %v1434 = vld [vmem:[#allocation2 + $0x1e8] sm:$0xff]
      %v1435 = vld [vmem:[#allocation2 + $0x1f0] sm:$0xff]
      %v1436 = vld [vmem:[#allocation2 + $0x1f8] sm:$0xff]
      %v1437 = vmul.f32 %v1373, %v1373
      %v1438 = vmul.f32 %v1374, %v1374
      %v1439 = vmul.f32 %v1375, %v1375
      %v1440 = vmul.f32 %v1376, %v1376
      %v1441 = vmul.f32 %v1377, %v1377
      %v1442 = vmul.f32 %v1378, %v1378
      %v1443 = vmul.f32 %v1379, %v1379
      %v1444 = vmul.f32 %v1380, %v1380
      %v1445 = vmul.f32 %v1381, %v1381
      %v1446 = vmul.f32 %v1382, %v1382
      %v1447 = vmul.f32 %v1383, %v1383
      %v1448 = vmul.f32 %v1384, %v1384
      %v1449 = vmul.f32 %v1385, %v1385
      %v1450 = vmul.f32 %v1386, %v1386
      %v1451 = vmul.f32 %v1387, %v1387
      %v1452 = vmul.f32 %v1388, %v1388
      %v1453 = vmul.f32 %v1389, %v1389
      %v1454 = vmul.f32 %v1390, %v1390
      %v1455 = vmul.f32 %v1391, %v1391
      %v1456 = vmul.f32 %v1392, %v1392
      %v1457 = vmul.f32 %v1393, %v1393
      %v1458 = vmul.f32 %v1394, %v1394
      %v1459 = vmul.f32 %v1395, %v1395
      %v1460 = vmul.f32 %v1396, %v1396
      %v1461 = vmul.f32 %v1397, %v1397
      %v1462 = vmul.f32 %v1398, %v1398
      %v1463 = vmul.f32 %v1399, %v1399
      %v1464 = vmul.f32 %v1400, %v1400
      %v1465 = vmul.f32 %v1401, %v1401
      %v1466 = vmul.f32 %v1402, %v1402
      %v1467 = vmul.f32 %v1403, %v1403
      %v1468 = vmul.f32 %v1404, %v1404
      %v1469 = vmul.f32 %v1405, %v1405
      %v1470 = vmul.f32 %v1406, %v1406
      %v1471 = vmul.f32 %v1407, %v1407
      %v1472 = vmul.f32 %v1408, %v1408
      %v1473 = vmul.f32 %v1409, %v1409
      %v1474 = vmul.f32 %v1410, %v1410
      %v1475 = vmul.f32 %v1411, %v1411
      %v1476 = vmul.f32 %v1412, %v1412
      %v1477 = vmul.f32 %v1413, %v1413
      %v1478 = vmul.f32 %v1414, %v1414
      %v1479 = vmul.f32 %v1415, %v1415
      %v1480 = vmul.f32 %v1416, %v1416
      %v1481 = vmul.f32 %v1417, %v1417
      %v1482 = vmul.f32 %v1418, %v1418
      %v1483 = vmul.f32 %v1419, %v1419
      %v1484 = vmul.f32 %v1420, %v1420
      %v1485 = vmul.f32 %v1421, %v1421
      %v1486 = vmul.f32 %v1422, %v1422
      %v1487 = vmul.f32 %v1423, %v1423
      %v1488 = vmul.f32 %v1424, %v1424
      %v1489 = vmul.f32 %v1425, %v1425
      %v1490 = vmul.f32 %v1426, %v1426
      %v1491 = vmul.f32 %v1427, %v1427
      %v1492 = vmul.f32 %v1428, %v1428
      %v1493 = vmul.f32 %v1429, %v1429
      %v1494 = vmul.f32 %v1430, %v1430
      %v1495 = vmul.f32 %v1431, %v1431
      %v1496 = vmul.f32 %v1432, %v1432
      %v1497 = vmul.f32 %v1433, %v1433
      %v1498 = vmul.f32 %v1434, %v1434
      %v1499 = vmul.f32 %v1435, %v1435
      %v1500 = vmul.f32 %v1436, %v1436
      %v1502 = vsel %vm867, 1.0, 0
      %v1505 = vsel %vm867, %v1437, 0
      %v1508 = vsel %vm867, %v1438, 0
      %v1511 = vsel %vm867, %v1439, 0
      %v1514 = vsel %vm867, %v1440, 0
      %v1517 = vsel %vm867, %v1441, 0
      %v1520 = vsel %vm867, %v1442, 0
      %v1523 = vsel %vm867, %v1443, 0
      %v1526 = vsel %vm867, %v1444, 0
      %v1529 = vsel %vm867, %v1445, 0
      %v1532 = vsel %vm867, %v1446, 0
      %v1535 = vsel %vm867, %v1447, 0
      %v1538 = vsel %vm867, %v1448, 0
      %v1541 = vsel %vm867, %v1449, 0
      %v1544 = vsel %vm867, %v1450, 0
      %v1547 = vsel %vm867, %v1451, 0
      %v1550 = vsel %vm867, %v1452, 0
      %v1553 = vsel %vm867, %v1453, 0
      %v1556 = vsel %vm867, %v1454, 0
      %v1559 = vsel %vm867, %v1455, 0
      %v1562 = vsel %vm867, %v1456, 0
      %v1565 = vsel %vm867, %v1457, 0
      %v1568 = vsel %vm867, %v1458, 0
      %v1571 = vsel %vm867, %v1459, 0
      %v1574 = vsel %vm867, %v1460, 0
      %v1577 = vsel %vm867, %v1461, 0
      %v1580 = vsel %vm867, %v1462, 0
      %v1583 = vsel %vm867, %v1463, 0
      %v1586 = vsel %vm867, %v1464, 0
      %v1589 = vsel %vm867, %v1465, 0
      %v1592 = vsel %vm867, %v1466, 0
      %v1595 = vsel %vm867, %v1467, 0
      %v1598 = vsel %vm867, %v1468, 0
      %v1601 = vsel %vm867, %v1469, 0
      %v1604 = vsel %vm867, %v1470, 0
      %v1607 = vsel %vm867, %v1471, 0
      %v1610 = vsel %vm867, %v1472, 0
      %v1613 = vsel %vm867, %v1473, 0
      %v1616 = vsel %vm867, %v1474, 0
      %v1619 = vsel %vm867, %v1475, 0
      %v1622 = vsel %vm867, %v1476, 0
      %v1625 = vsel %vm867, %v1477, 0
      %v1628 = vsel %vm867, %v1478, 0
      %v1631 = vsel %vm867, %v1479, 0
      %v1634 = vsel %vm867, %v1480, 0
      %v1637 = vsel %vm867, %v1481, 0
      %v1640 = vsel %vm867, %v1482, 0
      %v1643 = vsel %vm867, %v1483, 0
      %v1646 = vsel %vm867, %v1484, 0
      %v1649 = vsel %vm867, %v1485, 0
      %v1652 = vsel %vm867, %v1486, 0
      %v1655 = vsel %vm867, %v1487, 0
      %v1658 = vsel %vm867, %v1488, 0
      %v1661 = vsel %vm867, %v1489, 0
      %v1664 = vsel %vm867, %v1490, 0
      %v1667 = vsel %vm867, %v1491, 0
      %v1670 = vsel %vm867, %v1492, 0
      %v1673 = vsel %vm867, %v1493, 0
      %v1676 = vsel %vm867, %v1494, 0
      %v1679 = vsel %vm867, %v1495, 0
      %v1682 = vsel %vm867, %v1496, 0
      %v1685 = vsel %vm867, %v1497, 0
      %v1688 = vsel %vm867, %v1498, 0
      %v1691 = vsel %vm867, %v1499, 0
      %v1694 = vsel %vm867, %v1500, 0
      %1696 = vmatprep.subr.mxu0 0.0
      %1697 = vmatpush1.xpose.msra.mxu0 %v1550
      %1698 = vmatprep.subr.mxu0 0.0
      %1699 = vmatpush1.xpose.msra.mxu0 %v1547
      %1700 = vmatprep.subr.mxu0 0.0
      %1701 = vmatpush1.xpose.msra.mxu0 %v1544
      %1702 = vmatprep.subr.mxu0 0.0
      %1703 = vmatpush1.xpose.msra.mxu0 %v1541
      %1704 = vmatprep.subr.mxu0 0.0
      %1705 = vmatpush1.xpose.msra.mxu0 %v1538
      %1706 = vmatprep.subr.mxu0 0.0
      %1707 = vmatpush1.xpose.msra.mxu0 %v1535
      %1708 = vmatprep.subr.mxu0 0.0
      %1709 = vmatpush1.xpose.msra.mxu0 %v1532
      %1710 = vmatprep.subr.mxu0 0.0
      %1711 = vmatpush1.xpose.msra.mxu0 %v1529
      %1712 = vmatprep.subr.mxu0 0.0
      %1713 = vmatpush1.xpose.msra.mxu0 %v1526
      %1714 = vmatprep.subr.mxu0 0.0
      %1715 = vmatpush1.xpose.msra.mxu0 %v1523
      %1716 = vmatprep.subr.mxu0 0.0
      %1717 = vmatpush1.xpose.msra.mxu0 %v1520
      %1718 = vmatprep.subr.mxu0 0.0
      %1719 = vmatpush1.xpose.msra.mxu0 %v1517
      %1720 = vmatprep.subr.mxu0 0.0
      %1721 = vmatpush1.xpose.msra.mxu0 %v1514
      %1722 = vmatprep.subr.mxu0 0.0
      %1723 = vmatpush1.xpose.msra.mxu0 %v1511
      %1724 = vmatprep.subr.mxu0 0.0
      %1725 = vmatpush1.xpose.msra.mxu0 %v1508
      %1726 = vmatprep.subr.mxu0 0.0
      %1727 = vmatpush1.xpose.msra.mxu0 %v1505
      %1728 = vmatprep.subr.mxu0 0.0
      %1729 = vmatpush2.xpose.msra.mxu0 %v1598
      %1730 = vmatprep.subr.mxu0 0.0
      %1731 = vmatpush2.xpose.msra.mxu0 %v1595
      %1732 = vmatprep.subr.mxu0 0.0
      %1733 = vmatpush2.xpose.msra.mxu0 %v1592
      %1734 = vmatprep.subr.mxu0 0.0
      %1735 = vmatpush2.xpose.msra.mxu0 %v1589
      %1736 = vmatprep.subr.mxu0 0.0
      %1737 = vmatpush2.xpose.msra.mxu0 %v1586
      %1738 = vmatprep.subr.mxu0 0.0
      %1739 = vmatpush2.xpose.msra.mxu0 %v1583
      %1740 = vmatprep.subr.mxu0 0.0
      %1741 = vmatpush2.xpose.msra.mxu0 %v1580
      %1742 = vmatprep.subr.mxu0 0.0
      %1743 = vmatpush2.xpose.msra.mxu0 %v1577
      %1744 = vmatprep.subr.mxu0 0.0
      %1745 = vmatpush2.xpose.msra.mxu0 %v1574
      %1746 = vmatprep.subr.mxu0 0.0
      %1747 = vmatpush2.xpose.msra.mxu0 %v1571
      %1748 = vmatprep.subr.mxu0 0.0
      %1749 = vmatpush2.xpose.msra.mxu0 %v1568
      %1750 = vmatprep.subr.mxu0 0.0
      %1751 = vmatpush2.xpose.msra.mxu0 %v1565
      %1752 = vmatprep.subr.mxu0 0.0
      %1753 = vmatpush2.xpose.msra.mxu0 %v1562
      %1754 = vmatprep.subr.mxu0 0.0
      %1755 = vmatpush2.xpose.msra.mxu0 %v1559
      %1756 = vmatprep.subr.mxu0 0.0
      %1757 = vmatpush2.xpose.msra.mxu0 %v1556
      %1758 = vmatprep.subr.mxu0 0.0
      %1759 = vmatpush2.xpose.msra.mxu0 %v1553
      %1760 = vmatprep.mubr.f32.mxu0 0.0
      %1761 = vmatmul.mubr.f32.gmra.mxu0 %v1502
      %v1762 = vpop.f32.mrf.mxu0
      %v1763 = vadd.f32 0.0, %v1762
      %v1764 = vpop.f32.mrf.mxu0
      %v1765 = vadd.f32 0.0, %v1764
      %1766 = vdwg.mxu0
      %1767 = vmatprep.subr.mxu0 0.0
      %1768 = vmatpush1.xpose.msra.mxu0 %v1646
      %1769 = vmatprep.subr.mxu0 0.0
      %1770 = vmatpush1.xpose.msra.mxu0 %v1643
      %1771 = vmatprep.subr.mxu0 0.0
      %1772 = vmatpush1.xpose.msra.mxu0 %v1640
      %1773 = vmatprep.subr.mxu0 0.0
      %1774 = vmatpush1.xpose.msra.mxu0 %v1637
      %1775 = vmatprep.subr.mxu0 0.0
      %1776 = vmatpush1.xpose.msra.mxu0 %v1634
      %1777 = vmatprep.subr.mxu0 0.0
      %1778 = vmatpush1.xpose.msra.mxu0 %v1631
      %1779 = vmatprep.subr.mxu0 0.0
      %1780 = vmatpush1.xpose.msra.mxu0 %v1628
      %1781 = vmatprep.subr.mxu0 0.0
      %1782 = vmatpush1.xpose.msra.mxu0 %v1625
      %1783 = vmatprep.subr.mxu0 0.0
      %1784 = vmatpush1.xpose.msra.mxu0 %v1622
      %1785 = vmatprep.subr.mxu0 0.0
      %1786 = vmatpush1.xpose.msra.mxu0 %v1619
      %1787 = vmatprep.subr.mxu0 0.0
      %1788 = vmatpush1.xpose.msra.mxu0 %v1616
      %1789 = vmatprep.subr.mxu0 0.0
      %1790 = vmatpush1.xpose.msra.mxu0 %v1613
      %1791 = vmatprep.subr.mxu0 0.0
      %1792 = vmatpush1.xpose.msra.mxu0 %v1610
      %1793 = vmatprep.subr.mxu0 0.0
      %1794 = vmatpush1.xpose.msra.mxu0 %v1607
      %1795 = vmatprep.subr.mxu0 0.0
      %1796 = vmatpush1.xpose.msra.mxu0 %v1604
      %1797 = vmatprep.subr.mxu0 0.0
      %1798 = vmatpush1.xpose.msra.mxu0 %v1601
      %1799 = vmatprep.subr.mxu0 0.0
      %1800 = vmatpush2.xpose.msra.mxu0 %v1694
      %1801 = vmatprep.subr.mxu0 0.0
      %1802 = vmatpush2.xpose.msra.mxu0 %v1691
      %1803 = vmatprep.subr.mxu0 0.0
      %1804 = vmatpush2.xpose.msra.mxu0 %v1688
      %1805 = vmatprep.subr.mxu0 0.0
      %1806 = vmatpush2.xpose.msra.mxu0 %v1685
      %1807 = vmatprep.subr.mxu0 0.0
      %1808 = vmatpush2.xpose.msra.mxu0 %v1682
      %1809 = vmatprep.subr.mxu0 0.0
      %1810 = vmatpush2.xpose.msra.mxu0 %v1679
      %1811 = vmatprep.subr.mxu0 0.0
      %1812 = vmatpush2.xpose.msra.mxu0 %v1676
      %1813 = vmatprep.subr.mxu0 0.0
      %1814 = vmatpush2.xpose.msra.mxu0 %v1673
      %1815 = vmatprep.subr.mxu0 0.0
      %1816 = vmatpush2.xpose.msra.mxu0 %v1670
      %1817 = vmatprep.subr.mxu0 0.0
      %1818 = vmatpush2.xpose.msra.mxu0 %v1667
      %1819 = vmatprep.subr.mxu0 0.0
      %1820 = vmatpush2.xpose.msra.mxu0 %v1664
      %1821 = vmatprep.subr.mxu0 0.0
      %1822 = vmatpush2.xpose.msra.mxu0 %v1661
      %1823 = vmatprep.subr.mxu0 0.0
      %1824 = vmatpush2.xpose.msra.mxu0 %v1658
      %1825 = vmatprep.subr.mxu0 0.0
      %1826 = vmatpush2.xpose.msra.mxu0 %v1655
      %1827 = vmatprep.subr.mxu0 0.0
      %1828 = vmatpush2.xpose.msra.mxu0 %v1652
      %1829 = vmatprep.subr.mxu0 0.0
      %1830 = vmatpush2.xpose.msra.mxu0 %v1649
      %1831 = vmatprep.mubr.f32.mxu0 0.0
      %1832 = vmatmul.mubr.f32.gmra.mxu0 %v1502
      %v1833 = vpop.f32.mrf.mxu0
      %v1834 = vadd.f32 0.0, %v1833
      %v1835 = vpop.f32.mrf.mxu0
      %v1836 = vadd.f32 0.0, %v1835
      %1837 = vdwg.mxu0
      %v1838 = vld [vmem:[#allocation3] sm:$0xf]
      %v1840 = vlaneseq
      %v1841 = vshrl.u32 %v1840, 7
      %v1842 = vsub.s32 0, %v1841
      %v1843 = vrot.slane %v1838, %v1842
      %v1844 = vlaneseq
      %v1845 = vshrl.u32 %v1844, 7
      %v1846 = vsub.s32 1, %v1845
      %v1847 = vrot.slane %v1838, %v1846
      %v1848 = vlaneseq
      %v1849 = vshrl.u32 %v1848, 7
      %v1850 = vsub.s32 2, %v1849
      %v1851 = vrot.slane %v1838, %v1850
      %v1852 = vlaneseq
      %v1853 = vshrl.u32 %v1852, 7
      %v1854 = vsub.s32 3, %v1853
      %v1855 = vrot.slane %v1838, %v1854
      %v1860 = vsub.f32 %v1763, %v1843
      %v1861 = vsub.f32 %v1765, %v1847
      %v1862 = vsub.f32 %v1834, %v1851
      %v1863 = vsub.f32 %v1836, %v1855
      %v1864 = vmul.f32 %v1860, 0.5
      %v1865 = vmul.f32 %v1861, 0.5
      %v1866 = vmul.f32 %v1862, 0.5
      %v1867 = vmul.f32 %v1863, 0.5
      %v1872 = vcombine.low %v1864, %v1865
      %v1873 = vcombine.low %v1866, %v1867
      %v1875 = vunpack.c.l.s4 1966171168
      %v1876 = vunpack.c.0.s8 %v1875
      %v1877 = vlaneseq
      %v1878 = vshrl.u32 %v1877, 7
      %v1879 = vsub.s32 %v1876, %v1878
      %v1880 = vrot.slane %v1872, %v1879
      %v1882 = vunpack.c.l.s4 1966171168
      %v1883 = vunpack.c.0.s8 %v1882
      %v1884 = vlaneseq
      %v1885 = vshrl.u32 %v1884, 7
      %v1886 = vsub.s32 %v1883, %v1885
      %v1887 = vrot.slane %v1873, %v1886
      %v1888 = vcombine.low %v1880, %v1887
      %v1890 = vunpack.c.l.s4 1966171168
      %v1891 = vunpack.c.0.s8 %v1890
      %v1892 = vlaneseq
      %v1893 = vshrl.u32 %v1892, 7
      %v1894 = vsub.s32 %v1891, %v1893
      %v1895 = vrot.slane %v1888, %v1894
      %1897 = vst.msk [vmem:[#allocation4] sm:$0xf] %vm1368, %v1895
    $region21: #{tpu_custom_call.1} parent=1 // pred_fallthru
      _
    // Predicated region
    $region22: #{tpu_custom_call.1} parent=1 // pred_check
      _
    $region23: #{tpu_custom_call.1} parent=1 // pred_check_branch
      %1899 = sbr.rel (0) target = $region25
    $region24: #{tpu_custom_call.1} parent=1 // pred_region
      %s1901 = ssub.s32 64, 64
      %1902 = vsyncadd [#allocation5], %s1901
      %s1904 = sshll.u32 [#allocation4], 4
      %s1905 = int_to_ptr.vmem [resolvable:$true] %s1904
      %1907 = dma.vmem_to_hbm [thread:$0]  %s1905, 64, %s3, [#allocation5]
    $region25: #{tpu_custom_call.1} parent=1 // pred_fallthru
      _
    // Predicated region
    $region26: #{tpu_custom_call.1} parent=1 // pred_check
      _
    $region27: #{tpu_custom_call.1} parent=1 // pred_check_branch
      %1909 = sbr.rel (0) target = $region29
    $region28: #{tpu_custom_call.1} parent=1 // pred_region
      %1910 = dma.done [#allocation5], 64
    $region29: #{tpu_custom_call.1} parent=1 // pred_fallthru
      _
    %1911 = vsyncpa [#allocation5], 1

</llo_original>
